<compile_context>
chip_gen: v5e
topology: v5e:2x2
jax: 0.10.0
libtpu: 0.0.40
codegen_flags: <defaults>
</compile_context>

<pallas_src>
import jax
import jax.numpy as jnp
from jax.experimental import pallas as pl
from jax.experimental.pallas import tpu as pltpu


def _round_up(x, m):
    return ((x + m - 1) // m) * m


def _pick_time_chunk(T, max_chunk=256):
    if T <= max_chunk:
        return T
    for c in range(max_chunk, 0, -1):
        if T % c == 0:
            return c
    return 1


def _pick_batch_tile(Bp, max_tile=128):
    if Bp <= max_tile:
        return Bp
    for c in range(max_tile, 7, -8):
        if Bp % c == 0:
            return c
    return 8


# ----------------------------- Pallas kernel -------------------------------- #

def rnn_encoder_kernel(x_ref,        # (Tc, Bt, Cp) input chunk
                       w_in_ref,     # (Cp, 6Hp)  fused [fwd gates | bwd gates] input projection
                       w_hh_ref,     # (Hp, 3Hp)  forward hidden projection
                       b_in_ref,     # (1, 6Hp)   pre-folded input/gate biases
                       b_hhn_f_ref,  # (1, Hp)    forward  b_hh for the n gate
                       b_hhn_b_ref,  # (1, Hp)    backward b_hh for the n gate
                       wlin_f_ref,   # (Hp, Ep)   Linear weight, forward-hidden half
                       wlin_b_ref,   # (Hp, Ep)   Linear weight, backward-hidden half
                       blin_ref,     # (1, Ep)
                       out_ref,      # (Bt, Ep)
                       h_scr,        # VMEM (Bt, Hp) f32: forward hidden, carried across time chunks
                       gx_scr):      # VMEM (Tc*Bt, 6Hp) f32: hoisted input projection
    t_chunk = pl.program_id(1)
    n_chunks = pl.num_programs(1)
    Tc, Bt, Cp = x_ref.shape
    Hp = h_scr.shape[1]

    @pl.when(t_chunk == 0)
    def _init():
        h_scr[...] = jnp.zeros_like(h_scr)

    # ---- hoisted input projection: ONE MXU call for the whole chunk ----
    x2 = x_ref[...].reshape(Tc * Bt, Cp)
    gx_scr[...] = (jnp.dot(x2, w_in_ref[...], preferred_element_type=jnp.float32)
                   + b_in_ref[...])

    w_hh = w_hh_ref[...]
    b_hhn_f = b_hhn_f_ref[...]

    # ---- serial GRU recurrence over the chunk (only h @ W_hh is in the loop) ----
    def gru_step(t, h):
        row = pl.multiple_of(t * Bt, Bt)
        gx = gx_scr[pl.ds(row, Bt), pl.ds(0, 3 * Hp)]        # (Bt, 3Hp) forward gates
        gh = jnp.dot(h.astype(w_hh.dtype), w_hh,
                     preferred_element_type=jnp.float32)     # (Bt, 3Hp)
        r = jax.nn.sigmoid(gx[:, :Hp] + gh[:, :Hp])
        z = jax.nn.sigmoid(gx[:, Hp:2 * Hp] + gh[:, Hp:2 * Hp])
        n = jnp.tanh(gx[:, 2 * Hp:] + r * (gh[:, 2 * Hp:] + b_hhn_f))
        return (1.0 - z) * n + z * h

    h_new = jax.lax.fori_loop(0, Tc, gru_step, h_scr[...], unroll=min(Tc, 8))
    h_scr[...] = h_new

    # ---- final chunk: backward-direction single step on x[T-1] + Linear ----
    @pl.when(t_chunk == n_chunks - 1)
    def _finalize():
        # backward hidden starts at zero -> W_hh_b @ h0 == 0, only bias terms remain
        gxb = gx_scr[pl.ds((Tc - 1) * Bt, Bt), pl.ds(3 * Hp, 3 * Hp)]   # (Bt, 3Hp)
        rb = jax.nn.sigmoid(gxb[:, :Hp])
        zb = jax.nn.sigmoid(gxb[:, Hp:2 * Hp])
        nb = jnp.tanh(gxb[:, 2 * Hp:] + rb * b_hhn_b_ref[...])
        h_b = (1.0 - zb) * nb

        dt = wlin_f_ref.dtype
        out = (jnp.dot(h_new.astype(dt), wlin_f_ref[...], preferred_element_type=jnp.float32)
               + jnp.dot(h_b.astype(dt), wlin_b_ref[...], preferred_element_type=jnp.float32)
               + blin_ref[...])
        out_ref[...] = out.astype(out_ref.dtype)


# ------------------------------- wrapper ------------------------------------ #

def _pad_gates(w, H, Hp):
    """w: (K, 3H), gate-blocked along last dim -> (K, 3Hp), zeros in padding."""
    K = w.shape[0]
    out = jnp.zeros((K, 3 * Hp), w.dtype)
    for g in range(3):
        out = out.at[:, g * Hp:g * Hp + H].set(w[:, g * H:(g + 1) * H])
    return out


def _pad_rows(w, Kp):
    return jnp.pad(w, ((0, Kp - w.shape[0]), (0, 0)))


def rnn_encoder_forward(x, params, compute_dtype=jnp.float32):
    """x: (batch, in_channel, seq_len). Returns (batch, encoding_size) float32.

    compute_dtype=jnp.bfloat16 enables the bf16 MXU path on v6e/v7x (f32 accumulation
    and f32 hidden state are preserved).
    """
    B, C, T = x.shape
    H = params["weight_hh_l0"].shape[1]
    E = params["lin_w"].shape[0]
    f32 = jnp.float32

    # Lane-dense padding (multiples of 128) and sublane-dense batch (multiple of 8).
    Hp = _round_up(H, 128)
    Cp = _round_up(C, 128)
    Ep = _round_up(E, 128)
    Bp = _round_up(B, 8)
    Bt = _pick_batch_tile(Bp)
    Tc = _pick_time_chunk(T)
    nb, nt = Bp // Bt, T // Tc

    # ---- input: (B, C, T) -> (T, Bp, Cp) zero-padded ----
    x_tbc = jnp.transpose(x, (2, 0, 1)).astype(compute_dtype)
    x_p = jnp.zeros((T, Bp, Cp), compute_dtype).at[:, :B, :C].set(x_tbc)

    # ---- fused input-projection weight: (Cp, 6Hp) = [fwd gates | bwd gates] ----
    wih_f = _pad_rows(_pad_gates(params["weight_ih_l0"].T.astype(f32), H, Hp), Cp)
    wih_b = _pad_rows(_pad_gates(params["weight_ih_l0_reverse"].T.astype(f32), H, Hp), Cp)
    w_in = jnp.concatenate([wih_f, wih_b], axis=1).astype(compute_dtype)

    # ---- forward hidden projection (Hp, 3Hp) ----
    w_hh = _pad_rows(_pad_gates(params["weight_hh_l0"].T.astype(f32), H, Hp),
                     Hp).astype(compute_dtype)

    # ---- pre-folded biases: r,z get b_ih + b_hh; n keeps only b_ih here ----
    def fold_bias(bih, bhh):
        b = jnp.concatenate([bih[:2 * H] + bhh[:2 * H], bih[2 * H:]]).reshape(1, 3 * H)
        return _pad_gates(b.astype(f32), H, Hp)

    b_in = jnp.concatenate(
        [fold_bias(params["bias_ih_l0"], params["bias_hh_l0"]),
         fold_bias(params["bias_ih_l0_reverse"], params["bias_hh_l0_reverse"])], axis=1)

    def pad_vec(v, P):
        return jnp.zeros((1, P), f32).at[0, :v.shape[0]].set(v.astype(f32))

    b_hhn_f = pad_vec(params["bias_hh_l0"][2 * H:], Hp)
    b_hhn_b = pad_vec(params["bias_hh_l0_reverse"][2 * H:], Hp)

    # ---- final Linear, split into fwd/bwd halves (no concat in the kernel) ----
    wlin_t = params["lin_w"].T.astype(f32)                        # (2H, E)
    wlin_f = jnp.zeros((Hp, Ep), f32).at[:H, :E].set(wlin_t[:H]).astype(compute_dtype)
    wlin_b = jnp.zeros((Hp, Ep), f32).at[:H, :E].set(wlin_t[H:]).astype(compute_dtype)
    blin = pad_vec(params["lin_b"], Ep)

    def const(shape):
        return pl.BlockSpec(shape, lambda bi, ti, _s=shape: (0,) * len(_s))

    grid_spec = pltpu.PrefetchScalarGridSpec(
        num_scalar_prefetch=0,
        grid=(nb, nt),                                            # batch tiles x time chunks
        in_specs=[
            pl.BlockSpec((Tc, Bt, Cp), lambda bi, ti: (ti, bi, 0)),   # x chunk
            const((Cp, 6 * Hp)),                                      # w_in  (invariant)
            const((Hp, 3 * Hp)),                                      # w_hh  (invariant)
            const((1, 6 * Hp)),                                       # b_in
            const((1, Hp)), const((1, Hp)),                           # b_hh(n) fwd / bwd
            const((Hp, Ep)), const((Hp, Ep)), const((1, Ep)),         # linear
        ],
        out_specs=pl.BlockSpec((Bt, Ep), lambda bi, ti: (bi, 0)),
        scratch_shapes=[
            pltpu.VMEM((Bt, Hp), jnp.float32),            # forward hidden state
            pltpu.VMEM((Tc * Bt, 6 * Hp), jnp.float32),   # hoisted input projection
        ],
    )

    out_p = pl.pallas_call(
        rnn_encoder_kernel,
        out_shape=jax.ShapeDtypeStruct((Bp, Ep), jnp.float32),
        grid_spec=grid_spec,
        compiler_params=pltpu.CompilerParams(
            dimension_semantics=("parallel", "arbitrary")),
    )(x_p, w_in, w_hh, b_in, b_hhn_f, b_hhn_b, wlin_f, wlin_b, blin)

    return out_p[:B, :E]


# ------------------------- pure-JAX reference (check) ----------------------- #

def _gru_cell(h, x_t, wih, whh, bih, bhh):
    H = h.shape[-1]
    gx = x_t @ wih.T + bih
    gh = h @ whh.T + bhh
    r = jax.nn.sigmoid(gx[:, :H] + gh[:, :H])
    z = jax.nn.sigmoid(gx[:, H:2 * H] + gh[:, H:2 * H])
    n = jnp.tanh(gx[:, 2 * H:] + r * gh[:, 2 * H:])
    return (1.0 - z) * n + z * h


def rnn_encoder_reference(x, p):
    x_tbc = jnp.transpose(x, (2, 0, 1)).astype(jnp.float32)
    T, B, _ = x_tbc.shape
    H = p["weight_hh_l0"].shape[1]
    h0 = jnp.zeros((B, H), jnp.float32)

    def fwd(h, xt):
        h2 = _gru_cell(h, xt, p["weight_ih_l0"], p["weight_hh_l0"],
                       p["bias_ih_l0"], p["bias_hh_l0"])
        return h2, h2

    h_f_last, _ = jax.lax.scan(fwd, h0, x_tbc)

    def bwd(h, xt):
        h2 = _gru_cell(h, xt, p["weight_ih_l0_reverse"], p["weight_hh_l0_reverse"],
                       p["bias_ih_l0_reverse"], p["bias_hh_l0_reverse"])
        return h2, h2

    _, h_b_outs = jax.lax.scan(bwd, h0, x_tbc[::-1])
    h_b_aligned = h_b_outs[::-1]
    out_last = jnp.concatenate([h_f_last, h_b_aligned[-1]], axis=-1)
    return out_last @ p["lin_w"].T + p["lin_b"]


# --------------------------------- main -------------------------------------- #

def init_params(key, in_channel, hidden_size, encoding_size):
    """Deterministic PyTorch-style uniform(-1/sqrt(H), 1/sqrt(H)) init."""
    H, C, E = hidden_size, in_channel, encoding_size
    k_rnn = 1.0 / jnp.sqrt(H)
    k_lin = 1.0 / jnp.sqrt(2 * H)
    keys = jax.random.split(key, 10)

    def u(k, shape, bound):
        return jax.random.uniform(k, shape, jnp.float32, -bound, bound)

    return {
        "weight_ih_l0": u(keys[0], (3 * H, C), k_rnn),
        "weight_hh_l0": u(keys[1], (3 * H, H), k_rnn),
        "bias_ih_l0": u(keys[2], (3 * H,), k_rnn),
        "bias_hh_l0": u(keys[3], (3 * H,), k_rnn),
        "weight_ih_l0_reverse": u(keys[4], (3 * H, C), k_rnn),
        "weight_hh_l0_reverse": u(keys[5], (3 * H, H), k_rnn),
        "bias_ih_l0_reverse": u(keys[6], (3 * H,), k_rnn),
        "bias_hh_l0_reverse": u(keys[7], (3 * H,), k_rnn),
        "lin_w": u(keys[8], (E, 2 * H), k_lin),
        "lin_b": u(keys[9], (E,), k_lin),
    }


if __name__ == "__main__":
    batch, in_channel, seq_len = 2, 4, 8
    hidden_size, encoding_size = 32, 16

    key = jax.random.PRNGKey(0)
    k_x, k_p = jax.random.split(key)
    x = jax.random.normal(k_x, (batch, in_channel, seq_len), jnp.float32)
    params = init_params(k_p, in_channel, hidden_size, encoding_size)

    enc = rnn_encoder_forward(x, params)           # f32 path (exact check)
    enc = jax.block_until_ready(enc)

    ref = rnn_encoder_reference(x, params)
    assert enc.shape == (batch, encoding_size)
    max_err = float(jnp.max(jnp.abs(enc - ref)))
    assert max_err < 1e-4, f"max abs err = {max_err}"

    print("KERNEL_OK")
</pallas_src>

<mosaic_0001>
module attributes {stable_mosaic.version = 11 : i64} {
  func.func @rnn_encoder_kernel(%arg0: i32, %arg1: i32, %arg2: memref<8x8x128xf32, #tpu.memory_space<vmem>>, %arg3: memref<128x768xf32, #tpu.memory_space<vmem>>, %arg4: memref<128x384xf32, #tpu.memory_space<vmem>>, %arg5: memref<1x768xf32, #tpu.memory_space<vmem>>, %arg6: memref<1x128xf32, #tpu.memory_space<vmem>>, %arg7: memref<1x128xf32, #tpu.memory_space<vmem>>, %arg8: memref<128x128xf32, #tpu.memory_space<vmem>>, %arg9: memref<128x128xf32, #tpu.memory_space<vmem>>, %arg10: memref<1x128xf32, #tpu.memory_space<vmem>>, %arg11: memref<8x128xf32, #tpu.memory_space<vmem>>, %arg12: memref<8x128xf32, #tpu.memory_space<vmem>>, %arg13: memref<64x768xf32, #tpu.memory_space<vmem>>) attributes {dimension_semantics = [#tpu.dimension_semantics<parallel>, #tpu.dimension_semantics<arbitrary>], iteration_bounds = array<i64: 1, 1>, scalar_prefetch = 0 : i64, scratch_operands = 2 : i64, tpu.core_type = #tpu.core_type<tc>, window_params = [{transform_indices = @transform_0, window_bounds = array<i64: 8, 8, 128>}, {pipeline_mode = #tpu.pipeline_mode<synchronous>, transform_indices = @transform_1, window_bounds = array<i64: 128, 768>}, {pipeline_mode = #tpu.pipeline_mode<synchronous>, transform_indices = @transform_2, window_bounds = array<i64: 128, 384>}, {pipeline_mode = #tpu.pipeline_mode<synchronous>, transform_indices = @transform_3, window_bounds = array<i64: 1, 768>}, {pipeline_mode = #tpu.pipeline_mode<synchronous>, transform_indices = @transform_4, window_bounds = array<i64: 1, 128>}, {pipeline_mode = #tpu.pipeline_mode<synchronous>, transform_indices = @transform_5, window_bounds = array<i64: 1, 128>}, {pipeline_mode = #tpu.pipeline_mode<synchronous>, transform_indices = @transform_6, window_bounds = array<i64: 128, 128>}, {pipeline_mode = #tpu.pipeline_mode<synchronous>, transform_indices = @transform_7, window_bounds = array<i64: 128, 128>}, {pipeline_mode = #tpu.pipeline_mode<synchronous>, transform_indices = @transform_8, window_bounds = array<i64: 1, 128>}, {transform_indices = @transform_9, window_bounds = array<i64: 8, 128>}]} {
    %c0_i32 = arith.constant 0 : i32
    %0 = arith.cmpi eq, %arg1, %c0_i32 : i32
    %1 = arith.extui %0 : i1 to i32
    %c0_i32_0 = arith.constant 0 : i32
    %2 = arith.cmpi ne, %1, %c0_i32_0 : i32
    scf.if %2 {
      %cst_68 = arith.constant 0.000000e+00 : f32
      %282 = vector.broadcast %cst_68 : f32 to vector<8x128xf32>
      %c0_69 = arith.constant 0 : index
      %c0_70 = arith.constant 0 : index
      %283 = vector.load %arg12[%c0_69, %c0_70] : memref<8x128xf32, #tpu.memory_space<vmem>>, vector<8x128xf32>
      tpu.vector_store %arg12[%c0_69, %c0_70], %282 {strides = array<i32>} : memref<8x128xf32, #tpu.memory_space<vmem>>, vector<8x128xf32>,
    } else {
    }
    %c0 = arith.constant 0 : index
    %c0_1 = arith.constant 0 : index
    %c0_2 = arith.constant 0 : index
    %3 = vector.load %arg2[%c0, %c0_1, %c0_2] : memref<8x8x128xf32, #tpu.memory_space<vmem>>, vector<8x8x128xf32>
    %4 = vector.shape_cast %3 : vector<8x8x128xf32> to vector<64x128xf32>
    %c0_3 = arith.constant 0 : index
    %c0_4 = arith.constant 0 : index
    %5 = vector.load %arg3[%c0_3, %c0_4] : memref<128x768xf32, #tpu.memory_space<vmem>>, vector<128x768xf32>
    %cst = arith.constant dense<0.000000e+00> : vector<64x768xf32>
    %6 = tpu.matmul %4, %5, %cst {dimension_numbers = #tpu.dot_dimension_numbers<[1], [0], [0], [1], [0, 0, 1, 1], [], []>} : vector<64x128xf32>, vector<128x768xf32>, vector<64x768xf32> -> vector<64x768xf32>
    %c0_5 = arith.constant 0 : index
    %c0_6 = arith.constant 0 : index
    %7 = vector.load %arg5[%c0_5, %c0_6] : memref<1x768xf32, #tpu.memory_space<vmem>>, vector<1x768xf32>
    %8 = vector.broadcast %7 : vector<1x768xf32> to vector<64x768xf32>
    %9 = arith.addf %6, %8 : vector<64x768xf32>
    %c0_7 = arith.constant 0 : index
    %c0_8 = arith.constant 0 : index
    %10 = vector.load %arg13[%c0_7, %c0_8] : memref<64x768xf32, #tpu.memory_space<vmem>>, vector<64x768xf32>
    tpu.vector_store %arg13[%c0_7, %c0_8], %9 {strides = array<i32>} : memref<64x768xf32, #tpu.memory_space<vmem>>, vector<64x768xf32>,
    %c0_9 = arith.constant 0 : index
    %c0_10 = arith.constant 0 : index
    %11 = vector.load %arg4[%c0_9, %c0_10] : memref<128x384xf32, #tpu.memory_space<vmem>>, vector<128x384xf32>
    %c0_11 = arith.constant 0 : index
    %c0_12 = arith.constant 0 : index
    %12 = vector.load %arg6[%c0_11, %c0_12] : memref<1x128xf32, #tpu.memory_space<vmem>>, vector<1x128xf32>
    %c0_13 = arith.constant 0 : index
    %c0_14 = arith.constant 0 : index
    %13 = vector.load %arg12[%c0_13, %c0_14] : memref<8x128xf32, #tpu.memory_space<vmem>>, vector<8x128xf32>
    %c0_i32_15 = arith.constant 0 : i32
    %c8_i32 = arith.constant 8 : i32
    %14 = arith.muli %c0_i32_15, %c8_i32 : i32
    %15 = tpu.assume_multiple %14, 8 : i32
    %16 = arith.index_cast %15 : i32 to index
    %c0_16 = arith.constant 0 : index
    %17 = vector.load %arg13[%16, %c0_16] : memref<64x768xf32, #tpu.memory_space<vmem>>, vector<8x384xf32>
    %cst_17 = arith.constant dense<0.000000e+00> : vector<8x384xf32>
    %18 = tpu.matmul %13, %11, %cst_17 {dimension_numbers = #tpu.dot_dimension_numbers<[1], [0], [0], [1], [0, 0, 1, 1], [], []>} : vector<8x128xf32>, vector<128x384xf32>, vector<8x384xf32> -> vector<8x384xf32>
    %19 = vector.extract_strided_slice %17 {offsets = [0, 0], sizes = [8, 128], strides = [1, 1]} : vector<8x384xf32> to vector<8x128xf32>
    %20 = vector.extract_strided_slice %18 {offsets = [0, 0], sizes = [8, 128], strides = [1, 1]} : vector<8x384xf32> to vector<8x128xf32>
    %21 = arith.addf %19, %20 : vector<8x128xf32>
    %22 = arith.negf %21 : vector<8x128xf32>
    %23 = math.exp %22 : vector<8x128xf32>
    %cst_18 = arith.constant 1.000000e+00 : f32
    %24 = vector.broadcast %cst_18 : f32 to vector<8x128xf32>
    %25 = arith.addf %24, %23 : vector<8x128xf32>
    %26 = arith.divf %24, %25 : vector<8x128xf32>
    %27 = vector.extract_strided_slice %17 {offsets = [0, 128], sizes = [8, 128], strides = [1, 1]} : vector<8x384xf32> to vector<8x128xf32>
    %28 = vector.extract_strided_slice %18 {offsets = [0, 128], sizes = [8, 128], strides = [1, 1]} : vector<8x384xf32> to vector<8x128xf32>
    %29 = arith.addf %27, %28 : vector<8x128xf32>
    %30 = arith.negf %29 : vector<8x128xf32>
    %31 = math.exp %30 : vector<8x128xf32>
    %cst_19 = arith.constant 1.000000e+00 : f32
    %32 = vector.broadcast %cst_19 : f32 to vector<8x128xf32>
    %33 = arith.addf %32, %31 : vector<8x128xf32>
    %34 = arith.divf %32, %33 : vector<8x128xf32>
    %35 = vector.extract_strided_slice %17 {offsets = [0, 256], sizes = [8, 128], strides = [1, 1]} : vector<8x384xf32> to vector<8x128xf32>
    %36 = vector.extract_strided_slice %18 {offsets = [0, 256], sizes = [8, 128], strides = [1, 1]} : vector<8x384xf32> to vector<8x128xf32>
    %37 = vector.broadcast %12 : vector<1x128xf32> to vector<8x128xf32>
    %38 = arith.addf %36, %37 : vector<8x128xf32>
    %39 = arith.mulf %26, %38 : vector<8x128xf32>
    %40 = arith.addf %35, %39 : vector<8x128xf32>
    %41 = math.tanh %40 : vector<8x128xf32>
    %cst_20 = arith.constant 1.000000e+00 : f32
    %42 = vector.broadcast %cst_20 : f32 to vector<8x128xf32>
    %43 = arith.subf %42, %34 : vector<8x128xf32>
    %44 = arith.mulf %43, %41 : vector<8x128xf32>
    %45 = arith.mulf %34, %13 : vector<8x128xf32>
    %46 = arith.addf %44, %45 : vector<8x128xf32>
    %c1_i32 = arith.constant 1 : i32
    %c8_i32_21 = arith.constant 8 : i32
    %47 = arith.muli %c1_i32, %c8_i32_21 : i32
    %48 = tpu.assume_multiple %47, 8 : i32
    %49 = arith.index_cast %48 : i32 to index
    %c0_22 = arith.constant 0 : index
    %50 = vector.load %arg13[%49, %c0_22] : memref<64x768xf32, #tpu.memory_space<vmem>>, vector<8x384xf32>
    %cst_23 = arith.constant dense<0.000000e+00> : vector<8x384xf32>
    %51 = tpu.matmul %46, %11, %cst_23 {dimension_numbers = #tpu.dot_dimension_numbers<[1], [0], [0], [1], [0, 0, 1, 1], [], []>} : vector<8x128xf32>, vector<128x384xf32>, vector<8x384xf32> -> vector<8x384xf32>
    %52 = vector.extract_strided_slice %50 {offsets = [0, 0], sizes = [8, 128], strides = [1, 1]} : vector<8x384xf32> to vector<8x128xf32>
    %53 = vector.extract_strided_slice %51 {offsets = [0, 0], sizes = [8, 128], strides = [1, 1]} : vector<8x384xf32> to vector<8x128xf32>
    %54 = arith.addf %52, %53 : vector<8x128xf32>
    %55 = arith.negf %54 : vector<8x128xf32>
    %56 = math.exp %55 : vector<8x128xf32>
    %cst_24 = arith.constant 1.000000e+00 : f32
    %57 = vector.broadcast %cst_24 : f32 to vector<8x128xf32>
    %58 = arith.addf %57, %56 : vector<8x128xf32>
    %59 = arith.divf %57, %58 : vector<8x128xf32>
    %60 = vector.extract_strided_slice %50 {offsets = [0, 128], sizes = [8, 128], strides = [1, 1]} : vector<8x384xf32> to vector<8x128xf32>
    %61 = vector.extract_strided_slice %51 {offsets = [0, 128], sizes = [8, 128], strides = [1, 1]} : vector<8x384xf32> to vector<8x128xf32>
    %62 = arith.addf %60, %61 : vector<8x128xf32>
    %63 = arith.negf %62 : vector<8x128xf32>
    %64 = math.exp %63 : vector<8x128xf32>
    %cst_25 = arith.constant 1.000000e+00 : f32
    %65 = vector.broadcast %cst_25 : f32 to vector<8x128xf32>
    %66 = arith.addf %65, %64 : vector<8x128xf32>
    %67 = arith.divf %65, %66 : vector<8x128xf32>
    %68 = vector.extract_strided_slice %50 {offsets = [0, 256], sizes = [8, 128], strides = [1, 1]} : vector<8x384xf32> to vector<8x128xf32>
    %69 = vector.extract_strided_slice %51 {offsets = [0, 256], sizes = [8, 128], strides = [1, 1]} : vector<8x384xf32> to vector<8x128xf32>
    %70 = vector.broadcast %12 : vector<1x128xf32> to vector<8x128xf32>
    %71 = arith.addf %69, %70 : vector<8x128xf32>
    %72 = arith.mulf %59, %71 : vector<8x128xf32>
    %73 = arith.addf %68, %72 : vector<8x128xf32>
    %74 = math.tanh %73 : vector<8x128xf32>
    %cst_26 = arith.constant 1.000000e+00 : f32
    %75 = vector.broadcast %cst_26 : f32 to vector<8x128xf32>
    %76 = arith.subf %75, %67 : vector<8x128xf32>
    %77 = arith.mulf %76, %74 : vector<8x128xf32>
    %78 = arith.mulf %67, %46 : vector<8x128xf32>
    %79 = arith.addf %77, %78 : vector<8x128xf32>
    %c2_i32 = arith.constant 2 : i32
    %c8_i32_27 = arith.constant 8 : i32
    %80 = arith.muli %c2_i32, %c8_i32_27 : i32
    %81 = tpu.assume_multiple %80, 8 : i32
    %82 = arith.index_cast %81 : i32 to index
    %c0_28 = arith.constant 0 : index
    %83 = vector.load %arg13[%82, %c0_28] : memref<64x768xf32, #tpu.memory_space<vmem>>, vector<8x384xf32>
    %cst_29 = arith.constant dense<0.000000e+00> : vector<8x384xf32>
    %84 = tpu.matmul %79, %11, %cst_29 {dimension_numbers = #tpu.dot_dimension_numbers<[1], [0], [0], [1], [0, 0, 1, 1], [], []>} : vector<8x128xf32>, vector<128x384xf32>, vector<8x384xf32> -> vector<8x384xf32>
    %85 = vector.extract_strided_slice %83 {offsets = [0, 0], sizes = [8, 128], strides = [1, 1]} : vector<8x384xf32> to vector<8x128xf32>
    %86 = vector.extract_strided_slice %84 {offsets = [0, 0], sizes = [8, 128], strides = [1, 1]} : vector<8x384xf32> to vector<8x128xf32>
    %87 = arith.addf %85, %86 : vector<8x128xf32>
    %88 = arith.negf %87 : vector<8x128xf32>
    %89 = math.exp %88 : vector<8x128xf32>
    %cst_30 = arith.constant 1.000000e+00 : f32
    %90 = vector.broadcast %cst_30 : f32 to vector<8x128xf32>
    %91 = arith.addf %90, %89 : vector<8x128xf32>
    %92 = arith.divf %90, %91 : vector<8x128xf32>
    %93 = vector.extract_strided_slice %83 {offsets = [0, 128], sizes = [8, 128], strides = [1, 1]} : vector<8x384xf32> to vector<8x128xf32>
    %94 = vector.extract_strided_slice %84 {offsets = [0, 128], sizes = [8, 128], strides = [1, 1]} : vector<8x384xf32> to vector<8x128xf32>
    %95 = arith.addf %93, %94 : vector<8x128xf32>
    %96 = arith.negf %95 : vector<8x128xf32>
    %97 = math.exp %96 : vector<8x128xf32>
    %cst_31 = arith.constant 1.000000e+00 : f32
    %98 = vector.broadcast %cst_31 : f32 to vector<8x128xf32>
    %99 = arith.addf %98, %97 : vector<8x128xf32>
    %100 = arith.divf %98, %99 : vector<8x128xf32>
    %101 = vector.extract_strided_slice %83 {offsets = [0, 256], sizes = [8, 128], strides = [1, 1]} : vector<8x384xf32> to vector<8x128xf32>
    %102 = vector.extract_strided_slice %84 {offsets = [0, 256], sizes = [8, 128], strides = [1, 1]} : vector<8x384xf32> to vector<8x128xf32>
    %103 = vector.broadcast %12 : vector<1x128xf32> to vector<8x128xf32>
    %104 = arith.addf %102, %103 : vector<8x128xf32>
    %105 = arith.mulf %92, %104 : vector<8x128xf32>
    %106 = arith.addf %101, %105 : vector<8x128xf32>
    %107 = math.tanh %106 : vector<8x128xf32>
    %cst_32 = arith.constant 1.000000e+00 : f32
    %108 = vector.broadcast %cst_32 : f32 to vector<8x128xf32>
    %109 = arith.subf %108, %100 : vector<8x128xf32>
    %110 = arith.mulf %109, %107 : vector<8x128xf32>
    %111 = arith.mulf %100, %79 : vector<8x128xf32>
    %112 = arith.addf %110, %111 : vector<8x128xf32>
    %c3_i32 = arith.constant 3 : i32
    %c8_i32_33 = arith.constant 8 : i32
    %113 = arith.muli %c3_i32, %c8_i32_33 : i32
    %114 = tpu.assume_multiple %113, 8 : i32
    %115 = arith.index_cast %114 : i32 to index
    %c0_34 = arith.constant 0 : index
    %116 = vector.load %arg13[%115, %c0_34] : memref<64x768xf32, #tpu.memory_space<vmem>>, vector<8x384xf32>
    %cst_35 = arith.constant dense<0.000000e+00> : vector<8x384xf32>
    %117 = tpu.matmul %112, %11, %cst_35 {dimension_numbers = #tpu.dot_dimension_numbers<[1], [0], [0], [1], [0, 0, 1, 1], [], []>} : vector<8x128xf32>, vector<128x384xf32>, vector<8x384xf32> -> vector<8x384xf32>
    %118 = vector.extract_strided_slice %116 {offsets = [0, 0], sizes = [8, 128], strides = [1, 1]} : vector<8x384xf32> to vector<8x128xf32>
    %119 = vector.extract_strided_slice %117 {offsets = [0, 0], sizes = [8, 128], strides = [1, 1]} : vector<8x384xf32> to vector<8x128xf32>
    %120 = arith.addf %118, %119 : vector<8x128xf32>
    %121 = arith.negf %120 : vector<8x128xf32>
    %122 = math.exp %121 : vector<8x128xf32>
    %cst_36 = arith.constant 1.000000e+00 : f32
    %123 = vector.broadcast %cst_36 : f32 to vector<8x128xf32>
    %124 = arith.addf %123, %122 : vector<8x128xf32>
    %125 = arith.divf %123, %124 : vector<8x128xf32>
    %126 = vector.extract_strided_slice %116 {offsets = [0, 128], sizes = [8, 128], strides = [1, 1]} : vector<8x384xf32> to vector<8x128xf32>
    %127 = vector.extract_strided_slice %117 {offsets = [0, 128], sizes = [8, 128], strides = [1, 1]} : vector<8x384xf32> to vector<8x128xf32>
    %128 = arith.addf %126, %127 : vector<8x128xf32>
    %129 = arith.negf %128 : vector<8x128xf32>
    %130 = math.exp %129 : vector<8x128xf32>
    %cst_37 = arith.constant 1.000000e+00 : f32
    %131 = vector.broadcast %cst_37 : f32 to vector<8x128xf32>
    %132 = arith.addf %131, %130 : vector<8x128xf32>
    %133 = arith.divf %131, %132 : vector<8x128xf32>
    %134 = vector.extract_strided_slice %116 {offsets = [0, 256], sizes = [8, 128], strides = [1, 1]} : vector<8x384xf32> to vector<8x128xf32>
    %135 = vector.extract_strided_slice %117 {offsets = [0, 256], sizes = [8, 128], strides = [1, 1]} : vector<8x384xf32> to vector<8x128xf32>
    %136 = vector.broadcast %12 : vector<1x128xf32> to vector<8x128xf32>
    %137 = arith.addf %135, %136 : vector<8x128xf32>
    %138 = arith.mulf %125, %137 : vector<8x128xf32>
    %139 = arith.addf %134, %138 : vector<8x128xf32>
    %140 = math.tanh %139 : vector<8x128xf32>
    %cst_38 = arith.constant 1.000000e+00 : f32
    %141 = vector.broadcast %cst_38 : f32 to vector<8x128xf32>
    %142 = arith.subf %141, %133 : vector<8x128xf32>
    %143 = arith.mulf %142, %140 : vector<8x128xf32>
    %144 = arith.mulf %133, %112 : vector<8x128xf32>
    %145 = arith.addf %143, %144 : vector<8x128xf32>
    %c4_i32 = arith.constant 4 : i32
    %c8_i32_39 = arith.constant 8 : i32
    %146 = arith.muli %c4_i32, %c8_i32_39 : i32
    %147 = tpu.assume_multiple %146, 8 : i32
    %148 = arith.index_cast %147 : i32 to index
    %c0_40 = arith.constant 0 : index
    %149 = vector.load %arg13[%148, %c0_40] : memref<64x768xf32, #tpu.memory_space<vmem>>, vector<8x384xf32>
    %cst_41 = arith.constant dense<0.000000e+00> : vector<8x384xf32>
    %150 = tpu.matmul %145, %11, %cst_41 {dimension_numbers = #tpu.dot_dimension_numbers<[1], [0], [0], [1], [0, 0, 1, 1], [], []>} : vector<8x128xf32>, vector<128x384xf32>, vector<8x384xf32> -> vector<8x384xf32>
    %151 = vector.extract_strided_slice %149 {offsets = [0, 0], sizes = [8, 128], strides = [1, 1]} : vector<8x384xf32> to vector<8x128xf32>
    %152 = vector.extract_strided_slice %150 {offsets = [0, 0], sizes = [8, 128], strides = [1, 1]} : vector<8x384xf32> to vector<8x128xf32>
    %153 = arith.addf %151, %152 : vector<8x128xf32>
    %154 = arith.negf %153 : vector<8x128xf32>
    %155 = math.exp %154 : vector<8x128xf32>
    %cst_42 = arith.constant 1.000000e+00 : f32
    %156 = vector.broadcast %cst_42 : f32 to vector<8x128xf32>
    %157 = arith.addf %156, %155 : vector<8x128xf32>
    %158 = arith.divf %156, %157 : vector<8x128xf32>
    %159 = vector.extract_strided_slice %149 {offsets = [0, 128], sizes = [8, 128], strides = [1, 1]} : vector<8x384xf32> to vector<8x128xf32>
    %160 = vector.extract_strided_slice %150 {offsets = [0, 128], sizes = [8, 128], strides = [1, 1]} : vector<8x384xf32> to vector<8x128xf32>
    %161 = arith.addf %159, %160 : vector<8x128xf32>
    %162 = arith.negf %161 : vector<8x128xf32>
    %163 = math.exp %162 : vector<8x128xf32>
    %cst_43 = arith.constant 1.000000e+00 : f32
    %164 = vector.broadcast %cst_43 : f32 to vector<8x128xf32>
    %165 = arith.addf %164, %163 : vector<8x128xf32>
    %166 = arith.divf %164, %165 : vector<8x128xf32>
    %167 = vector.extract_strided_slice %149 {offsets = [0, 256], sizes = [8, 128], strides = [1, 1]} : vector<8x384xf32> to vector<8x128xf32>
    %168 = vector.extract_strided_slice %150 {offsets = [0, 256], sizes = [8, 128], strides = [1, 1]} : vector<8x384xf32> to vector<8x128xf32>
    %169 = vector.broadcast %12 : vector<1x128xf32> to vector<8x128xf32>
    %170 = arith.addf %168, %169 : vector<8x128xf32>
    %171 = arith.mulf %158, %170 : vector<8x128xf32>
    %172 = arith.addf %167, %171 : vector<8x128xf32>
    %173 = math.tanh %172 : vector<8x128xf32>
    %cst_44 = arith.constant 1.000000e+00 : f32
    %174 = vector.broadcast %cst_44 : f32 to vector<8x128xf32>
    %175 = arith.subf %174, %166 : vector<8x128xf32>
    %176 = arith.mulf %175, %173 : vector<8x128xf32>
    %177 = arith.mulf %166, %145 : vector<8x128xf32>
    %178 = arith.addf %176, %177 : vector<8x128xf32>
    %c5_i32 = arith.constant 5 : i32
    %c8_i32_45 = arith.constant 8 : i32
    %179 = arith.muli %c5_i32, %c8_i32_45 : i32
    %180 = tpu.assume_multiple %179, 8 : i32
    %181 = arith.index_cast %180 : i32 to index
    %c0_46 = arith.constant 0 : index
    %182 = vector.load %arg13[%181, %c0_46] : memref<64x768xf32, #tpu.memory_space<vmem>>, vector<8x384xf32>
    %cst_47 = arith.constant dense<0.000000e+00> : vector<8x384xf32>
    %183 = tpu.matmul %178, %11, %cst_47 {dimension_numbers = #tpu.dot_dimension_numbers<[1], [0], [0], [1], [0, 0, 1, 1], [], []>} : vector<8x128xf32>, vector<128x384xf32>, vector<8x384xf32> -> vector<8x384xf32>
    %184 = vector.extract_strided_slice %182 {offsets = [0, 0], sizes = [8, 128], strides = [1, 1]} : vector<8x384xf32> to vector<8x128xf32>
    %185 = vector.extract_strided_slice %183 {offsets = [0, 0], sizes = [8, 128], strides = [1, 1]} : vector<8x384xf32> to vector<8x128xf32>
    %186 = arith.addf %184, %185 : vector<8x128xf32>
    %187 = arith.negf %186 : vector<8x128xf32>
    %188 = math.exp %187 : vector<8x128xf32>
    %cst_48 = arith.constant 1.000000e+00 : f32
    %189 = vector.broadcast %cst_48 : f32 to vector<8x128xf32>
    %190 = arith.addf %189, %188 : vector<8x128xf32>
    %191 = arith.divf %189, %190 : vector<8x128xf32>
    %192 = vector.extract_strided_slice %182 {offsets = [0, 128], sizes = [8, 128], strides = [1, 1]} : vector<8x384xf32> to vector<8x128xf32>
    %193 = vector.extract_strided_slice %183 {offsets = [0, 128], sizes = [8, 128], strides = [1, 1]} : vector<8x384xf32> to vector<8x128xf32>
    %194 = arith.addf %192, %193 : vector<8x128xf32>
    %195 = arith.negf %194 : vector<8x128xf32>
    %196 = math.exp %195 : vector<8x128xf32>
    %cst_49 = arith.constant 1.000000e+00 : f32
    %197 = vector.broadcast %cst_49 : f32 to vector<8x128xf32>
    %198 = arith.addf %197, %196 : vector<8x128xf32>
    %199 = arith.divf %197, %198 : vector<8x128xf32>
    %200 = vector.extract_strided_slice %182 {offsets = [0, 256], sizes = [8, 128], strides = [1, 1]} : vector<8x384xf32> to vector<8x128xf32>
    %201 = vector.extract_strided_slice %183 {offsets = [0, 256], sizes = [8, 128], strides = [1, 1]} : vector<8x384xf32> to vector<8x128xf32>
    %202 = vector.broadcast %12 : vector<1x128xf32> to vector<8x128xf32>
    %203 = arith.addf %201, %202 : vector<8x128xf32>
    %204 = arith.mulf %191, %203 : vector<8x128xf32>
    %205 = arith.addf %200, %204 : vector<8x128xf32>
    %206 = math.tanh %205 : vector<8x128xf32>
    %cst_50 = arith.constant 1.000000e+00 : f32
    %207 = vector.broadcast %cst_50 : f32 to vector<8x128xf32>
    %208 = arith.subf %207, %199 : vector<8x128xf32>
    %209 = arith.mulf %208, %206 : vector<8x128xf32>
    %210 = arith.mulf %199, %178 : vector<8x128xf32>
    %211 = arith.addf %209, %210 : vector<8x128xf32>
    %c6_i32 = arith.constant 6 : i32
    %c8_i32_51 = arith.constant 8 : i32
    %212 = arith.muli %c6_i32, %c8_i32_51 : i32
    %213 = tpu.assume_multiple %212, 8 : i32
    %214 = arith.index_cast %213 : i32 to index
    %c0_52 = arith.constant 0 : index
    %215 = vector.load %arg13[%214, %c0_52] : memref<64x768xf32, #tpu.memory_space<vmem>>, vector<8x384xf32>
    %cst_53 = arith.constant dense<0.000000e+00> : vector<8x384xf32>
    %216 = tpu.matmul %211, %11, %cst_53 {dimension_numbers = #tpu.dot_dimension_numbers<[1], [0], [0], [1], [0, 0, 1, 1], [], []>} : vector<8x128xf32>, vector<128x384xf32>, vector<8x384xf32> -> vector<8x384xf32>
    %217 = vector.extract_strided_slice %215 {offsets = [0, 0], sizes = [8, 128], strides = [1, 1]} : vector<8x384xf32> to vector<8x128xf32>
    %218 = vector.extract_strided_slice %216 {offsets = [0, 0], sizes = [8, 128], strides = [1, 1]} : vector<8x384xf32> to vector<8x128xf32>
    %219 = arith.addf %217, %218 : vector<8x128xf32>
    %220 = arith.negf %219 : vector<8x128xf32>
    %221 = math.exp %220 : vector<8x128xf32>
    %cst_54 = arith.constant 1.000000e+00 : f32
    %222 = vector.broadcast %cst_54 : f32 to vector<8x128xf32>
    %223 = arith.addf %222, %221 : vector<8x128xf32>
    %224 = arith.divf %222, %223 : vector<8x128xf32>
    %225 = vector.extract_strided_slice %215 {offsets = [0, 128], sizes = [8, 128], strides = [1, 1]} : vector<8x384xf32> to vector<8x128xf32>
    %226 = vector.extract_strided_slice %216 {offsets = [0, 128], sizes = [8, 128], strides = [1, 1]} : vector<8x384xf32> to vector<8x128xf32>
    %227 = arith.addf %225, %226 : vector<8x128xf32>
    %228 = arith.negf %227 : vector<8x128xf32>
    %229 = math.exp %228 : vector<8x128xf32>
    %cst_55 = arith.constant 1.000000e+00 : f32
    %230 = vector.broadcast %cst_55 : f32 to vector<8x128xf32>
    %231 = arith.addf %230, %229 : vector<8x128xf32>
    %232 = arith.divf %230, %231 : vector<8x128xf32>
    %233 = vector.extract_strided_slice %215 {offsets = [0, 256], sizes = [8, 128], strides = [1, 1]} : vector<8x384xf32> to vector<8x128xf32>
    %234 = vector.extract_strided_slice %216 {offsets = [0, 256], sizes = [8, 128], strides = [1, 1]} : vector<8x384xf32> to vector<8x128xf32>
    %235 = vector.broadcast %12 : vector<1x128xf32> to vector<8x128xf32>
    %236 = arith.addf %234, %235 : vector<8x128xf32>
    %237 = arith.mulf %224, %236 : vector<8x128xf32>
    %238 = arith.addf %233, %237 : vector<8x128xf32>
    %239 = math.tanh %238 : vector<8x128xf32>
    %cst_56 = arith.constant 1.000000e+00 : f32
    %240 = vector.broadcast %cst_56 : f32 to vector<8x128xf32>
    %241 = arith.subf %240, %232 : vector<8x128xf32>
    %242 = arith.mulf %241, %239 : vector<8x128xf32>
    %243 = arith.mulf %232, %211 : vector<8x128xf32>
    %244 = arith.addf %242, %243 : vector<8x128xf32>
    %c7_i32 = arith.constant 7 : i32
    %c8_i32_57 = arith.constant 8 : i32
    %245 = arith.muli %c7_i32, %c8_i32_57 : i32
    %246 = tpu.assume_multiple %245, 8 : i32
    %247 = arith.index_cast %246 : i32 to index
    %c0_58 = arith.constant 0 : index
    %248 = vector.load %arg13[%247, %c0_58] : memref<64x768xf32, #tpu.memory_space<vmem>>, vector<8x384xf32>
    %cst_59 = arith.constant dense<0.000000e+00> : vector<8x384xf32>
    %249 = tpu.matmul %244, %11, %cst_59 {dimension_numbers = #tpu.dot_dimension_numbers<[1], [0], [0], [1], [0, 0, 1, 1], [], []>} : vector<8x128xf32>, vector<128x384xf32>, vector<8x384xf32> -> vector<8x384xf32>
    %250 = vector.extract_strided_slice %248 {offsets = [0, 0], sizes = [8, 128], strides = [1, 1]} : vector<8x384xf32> to vector<8x128xf32>
    %251 = vector.extract_strided_slice %249 {offsets = [0, 0], sizes = [8, 128], strides = [1, 1]} : vector<8x384xf32> to vector<8x128xf32>
    %252 = arith.addf %250, %251 : vector<8x128xf32>
    %253 = arith.negf %252 : vector<8x128xf32>
    %254 = math.exp %253 : vector<8x128xf32>
    %cst_60 = arith.constant 1.000000e+00 : f32
    %255 = vector.broadcast %cst_60 : f32 to vector<8x128xf32>
    %256 = arith.addf %255, %254 : vector<8x128xf32>
    %257 = arith.divf %255, %256 : vector<8x128xf32>
    %258 = vector.extract_strided_slice %248 {offsets = [0, 128], sizes = [8, 128], strides = [1, 1]} : vector<8x384xf32> to vector<8x128xf32>
    %259 = vector.extract_strided_slice %249 {offsets = [0, 128], sizes = [8, 128], strides = [1, 1]} : vector<8x384xf32> to vector<8x128xf32>
    %260 = arith.addf %258, %259 : vector<8x128xf32>
    %261 = arith.negf %260 : vector<8x128xf32>
    %262 = math.exp %261 : vector<8x128xf32>
    %cst_61 = arith.constant 1.000000e+00 : f32
    %263 = vector.broadcast %cst_61 : f32 to vector<8x128xf32>
    %264 = arith.addf %263, %262 : vector<8x128xf32>
    %265 = arith.divf %263, %264 : vector<8x128xf32>
    %266 = vector.extract_strided_slice %248 {offsets = [0, 256], sizes = [8, 128], strides = [1, 1]} : vector<8x384xf32> to vector<8x128xf32>
    %267 = vector.extract_strided_slice %249 {offsets = [0, 256], sizes = [8, 128], strides = [1, 1]} : vector<8x384xf32> to vector<8x128xf32>
    %268 = vector.broadcast %12 : vector<1x128xf32> to vector<8x128xf32>
    %269 = arith.addf %267, %268 : vector<8x128xf32>
    %270 = arith.mulf %257, %269 : vector<8x128xf32>
    %271 = arith.addf %266, %270 : vector<8x128xf32>
    %272 = math.tanh %271 : vector<8x128xf32>
    %cst_62 = arith.constant 1.000000e+00 : f32
    %273 = vector.broadcast %cst_62 : f32 to vector<8x128xf32>
    %274 = arith.subf %273, %265 : vector<8x128xf32>
    %275 = arith.mulf %274, %272 : vector<8x128xf32>
    %276 = arith.mulf %265, %244 : vector<8x128xf32>
    %277 = arith.addf %275, %276 : vector<8x128xf32>
    %c8_i32_63 = arith.constant 8 : i32
    %c0_64 = arith.constant 0 : index
    %c0_65 = arith.constant 0 : index
    %278 = vector.load %arg12[%c0_64, %c0_65] : memref<8x128xf32, #tpu.memory_space<vmem>>, vector<8x128xf32>
    tpu.vector_store %arg12[%c0_64, %c0_65], %277 {strides = array<i32>} : memref<8x128xf32, #tpu.memory_space<vmem>>, vector<8x128xf32>,
    %c0_i32_66 = arith.constant 0 : i32
    %279 = arith.cmpi eq, %arg1, %c0_i32_66 : i32
    %280 = arith.extui %279 : i1 to i32
    %c0_i32_67 = arith.constant 0 : i32
    %281 = arith.cmpi ne, %280, %c0_i32_67 : i32
    scf.if %281 {
      %c56 = arith.constant 56 : index
      %c384 = arith.constant 384 : index
      %282 = vector.load %arg13[%c56, %c384] : memref<64x768xf32, #tpu.memory_space<vmem>>, vector<8x384xf32>
      %283 = vector.extract_strided_slice %282 {offsets = [0, 0], sizes = [8, 128], strides = [1, 1]} : vector<8x384xf32> to vector<8x128xf32>
      %284 = arith.negf %283 : vector<8x128xf32>
      %285 = math.exp %284 : vector<8x128xf32>
      %cst_68 = arith.constant 1.000000e+00 : f32
      %286 = vector.broadcast %cst_68 : f32 to vector<8x128xf32>
      %287 = arith.addf %286, %285 : vector<8x128xf32>
      %288 = arith.divf %286, %287 : vector<8x128xf32>
      %289 = vector.extract_strided_slice %282 {offsets = [0, 128], sizes = [8, 128], strides = [1, 1]} : vector<8x384xf32> to vector<8x128xf32>
      %290 = arith.negf %289 : vector<8x128xf32>
      %291 = math.exp %290 : vector<8x128xf32>
      %cst_69 = arith.constant 1.000000e+00 : f32
      %292 = vector.broadcast %cst_69 : f32 to vector<8x128xf32>
      %293 = arith.addf %292, %291 : vector<8x128xf32>
      %294 = arith.divf %292, %293 : vector<8x128xf32>
      %295 = vector.extract_strided_slice %282 {offsets = [0, 256], sizes = [8, 128], strides = [1, 1]} : vector<8x384xf32> to vector<8x128xf32>
      %c0_70 = arith.constant 0 : index
      %c0_71 = arith.constant 0 : index
      %296 = vector.load %arg7[%c0_70, %c0_71] : memref<1x128xf32, #tpu.memory_space<vmem>>, vector<1x128xf32>
      %297 = vector.broadcast %296 : vector<1x128xf32> to vector<8x128xf32>
      %298 = arith.mulf %288, %297 : vector<8x128xf32>
      %299 = arith.addf %295, %298 : vector<8x128xf32>
      %300 = math.tanh %299 : vector<8x128xf32>
      %cst_72 = arith.constant 1.000000e+00 : f32
      %301 = vector.broadcast %cst_72 : f32 to vector<8x128xf32>
      %302 = arith.subf %301, %294 : vector<8x128xf32>
      %303 = arith.mulf %302, %300 : vector<8x128xf32>
      %c0_73 = arith.constant 0 : index
      %c0_74 = arith.constant 0 : index
      %304 = vector.load %arg8[%c0_73, %c0_74] : memref<128x128xf32, #tpu.memory_space<vmem>>, vector<128x128xf32>
      %cst_75 = arith.constant dense<0.000000e+00> : vector<8x128xf32>
      %305 = tpu.matmul %277, %304, %cst_75 {dimension_numbers = #tpu.dot_dimension_numbers<[1], [0], [0], [1], [0, 0, 1, 1], [], []>} : vector<8x128xf32>, vector<128x128xf32>, vector<8x128xf32> -> vector<8x128xf32>
      %c0_76 = arith.constant 0 : index
      %c0_77 = arith.constant 0 : index
      %306 = vector.load %arg9[%c0_76, %c0_77] : memref<128x128xf32, #tpu.memory_space<vmem>>, vector<128x128xf32>
      %cst_78 = arith.constant dense<0.000000e+00> : vector<8x128xf32>
      %307 = tpu.matmul %303, %306, %cst_78 {dimension_numbers = #tpu.dot_dimension_numbers<[1], [0], [0], [1], [0, 0, 1, 1], [], []>} : vector<8x128xf32>, vector<128x128xf32>, vector<8x128xf32> -> vector<8x128xf32>
      %308 = arith.addf %305, %307 : vector<8x128xf32>
      %c0_79 = arith.constant 0 : index
      %c0_80 = arith.constant 0 : index
      %309 = vector.load %arg10[%c0_79, %c0_80] : memref<1x128xf32, #tpu.memory_space<vmem>>, vector<1x128xf32>
      %310 = vector.broadcast %309 : vector<1x128xf32> to vector<8x128xf32>
      %311 = arith.addf %308, %310 : vector<8x128xf32>
      %c0_81 = arith.constant 0 : index
      %c0_82 = arith.constant 0 : index
      %312 = vector.load %arg11[%c0_81, %c0_82] : memref<8x128xf32, #tpu.memory_space<vmem>>, vector<8x128xf32>
      tpu.vector_store %arg11[%c0_81, %c0_82], %311 {strides = array<i32>} : memref<8x128xf32, #tpu.memory_space<vmem>>, vector<8x128xf32>,
    } else {
    }
    return
  }
  func.func @transform_0(%arg0: i32, %arg1: i32) -> (i32, i32, i32) {
    %c0_i32 = arith.constant 0 : i32
    %c0_i32_0 = arith.constant 0 : i32
    return %arg1, %arg0, %c0_i32 : i32, i32, i32
  }
  func.func @transform_1(%arg0: i32, %arg1: i32) -> (i32, i32) {
    %c0_i32 = arith.constant 0 : i32
    %c0_i32_0 = arith.constant 0 : i32
    %c0_i32_1 = arith.constant 0 : i32
    return %c0_i32, %c0_i32_0 : i32, i32
  }
  func.func @transform_2(%arg0: i32, %arg1: i32) -> (i32, i32) {
    %c0_i32 = arith.constant 0 : i32
    %c0_i32_0 = arith.constant 0 : i32
    %c0_i32_1 = arith.constant 0 : i32
    return %c0_i32, %c0_i32_0 : i32, i32
  }
  func.func @transform_3(%arg0: i32, %arg1: i32) -> (i32, i32) {
    %c0_i32 = arith.constant 0 : i32
    %c0_i32_0 = arith.constant 0 : i32
    %c0_i32_1 = arith.constant 0 : i32
    return %c0_i32, %c0_i32_0 : i32, i32
  }
  func.func @transform_4(%arg0: i32, %arg1: i32) -> (i32, i32) {
    %c0_i32 = arith.constant 0 : i32
    %c0_i32_0 = arith.constant 0 : i32
    %c0_i32_1 = arith.constant 0 : i32
    return %c0_i32, %c0_i32_0 : i32, i32
  }
  func.func @transform_5(%arg0: i32, %arg1: i32) -> (i32, i32) {
    %c0_i32 = arith.constant 0 : i32
    %c0_i32_0 = arith.constant 0 : i32
    %c0_i32_1 = arith.constant 0 : i32
    return %c0_i32, %c0_i32_0 : i32, i32
  }
  func.func @transform_6(%arg0: i32, %arg1: i32) -> (i32, i32) {
    %c0_i32 = arith.constant 0 : i32
    %c0_i32_0 = arith.constant 0 : i32
    %c0_i32_1 = arith.constant 0 : i32
    return %c0_i32, %c0_i32_0 : i32, i32
  }
  func.func @transform_7(%arg0: i32, %arg1: i32) -> (i32, i32) {
    %c0_i32 = arith.constant 0 : i32
    %c0_i32_0 = arith.constant 0 : i32
    %c0_i32_1 = arith.constant 0 : i32
    return %c0_i32, %c0_i32_0 : i32, i32
  }
  func.func @transform_8(%arg0: i32, %arg1: i32) -> (i32, i32) {
    %c0_i32 = arith.constant 0 : i32
    %c0_i32_0 = arith.constant 0 : i32
    %c0_i32_1 = arith.constant 0 : i32
    return %c0_i32, %c0_i32_0 : i32, i32
  }
  func.func @transform_9(%arg0: i32, %arg1: i32) -> (i32, i32) {
    %c0_i32 = arith.constant 0 : i32
    %c0_i32_0 = arith.constant 0 : i32
    return %arg0, %c0_i32 : i32, i32
  }
}

</mosaic_0001>

<llo_original>
// kernel: tpu_custom_call.1
$region0: #{tpu_custom_call.1}
  #allocation0 [shape = 'u32[]', space=smem, size = 0x4, offset = 0x4, fixed_abs, tag = 'smem constant byte address 0x4 - core index']
  #allocation1 [shape = 'u32[72,128]{1,0:T(1,128)}', space=vmem, size = 0x9000, scoped, tag = 'internal scratch']
  #allocation2 [shape = 'f32[8,128]{1,0:T(8,128)}', space=vmem, size = 0x1000, scoped, tag = 'scratch operand']
  #allocation3 [shape = 'f32[64,768]{1,0:T(8,128)}', space=vmem, size = 0x30000, scoped, tag = 'scratch operand']
  %s0 = inlined_call_operand.hbm [shape: f32[8,8,128], index: 0, kind: input, shape index: {}]
  %s1 = inlined_call_operand.hbm [shape: f32[128,768], index: 1, kind: input, shape index: {}]
  %s2 = inlined_call_operand.hbm [shape: f32[128,384], index: 2, kind: input, shape index: {}]
  %s3 = inlined_call_operand.hbm [shape: f32[1,768], index: 3, kind: input, shape index: {}]
  %s4 = inlined_call_operand.vmem [shape: f32[1,128], index: 4, kind: input, shape index: {}]
  %s5 = inlined_call_operand.vmem [shape: f32[1,128], index: 5, kind: input, shape index: {}]
  %s6 = inlined_call_operand.hbm [shape: f32[128,128], index: 6, kind: input, shape index: {}]
  %s7 = inlined_call_operand.hbm [shape: f32[128,128], index: 7, kind: input, shape index: {}]
  %s8 = inlined_call_operand.vmem [shape: f32[1,128], index: 8, kind: input, shape index: {}]
  %s9 = inlined_call_operand.hbm [shape: f32[8,128], index: 9, kind: output, shape index: {}]
  %s10 = sld [smem:[#allocation0]]
  $region78: #{tpu_custom_call.1} parent=0
    _
  %s12 = ssub.s32 1, %s10
  %s13 = scalar_select 0, %s12, %s10
  $region1: #{tpu_custom_call.1} parent=0
    #allocation4 [shape = 'u8[32768]{0}', space=vmem, size = 0x8000, scoped, tag = 'input window, operand 0, single buffered']
    #allocation5 [shape = 's32[1]{0}', space=sflag, size = 0x4, scoped, tag = 'scoped memory for tpu_custom_call.1']
    #allocation6 [shape = 's32[1]{0}', space=sflag, size = 0x4, scoped, tag = 'scoped memory for tpu_custom_call.1']
    #allocation7 [shape = 'u8[393216]{0}', space=vmem, size = 0x60000, scoped, tag = 'input window, operand 1, single buffered']
    #allocation8 [shape = 's32[1]{0}', space=sflag, size = 0x4, scoped, tag = 'scoped memory for tpu_custom_call.1']
    #allocation9 [shape = 'u8[196608]{0}', space=vmem, size = 0x30000, scoped, tag = 'input window, operand 2, single buffered']
    #allocation10 [shape = 'u8[3072]{0}', space=vmem, size = 0xc00, scoped, tag = 'input window, operand 3, single buffered']
    #allocation11 [shape = 's32[1]{0}', space=sflag, size = 0x4, scoped, tag = 'scoped memory for tpu_custom_call.1']
    #allocation12 [shape = 'u8[65536]{0}', space=vmem, size = 0x10000, scoped, tag = 'input window, operand 6, single buffered']
    #allocation13 [shape = 'u8[65536]{0}', space=vmem, size = 0x10000, scoped, tag = 'input window, operand 7, single buffered']
    #allocation14 [shape = 's32[1]{0}', space=sflag, size = 0x4, scoped, tag = 'scoped memory for tpu_custom_call.1']
    #allocation15 [shape = 'u8[4096]{0}', space=vmem, size = 0x1000, scoped, tag = 'output window, operand 0, single buffered']
    %14 = vsyncpa [#allocation5], 0
    %15 = vsyncpa [#allocation8], 0
    %16 = vsyncpa [#allocation11], 0
    %17 = vsyncpa [#allocation14], 0
    %18 = vsyncpa [#allocation6], 0
    // Predicated region
    $region2: #{tpu_custom_call.1} parent=1 // pred_check
      _
    $region3: #{tpu_custom_call.1} parent=1 // pred_check_branch
      %20 = sbr.rel (0) target = $region5
    $region4: #{tpu_custom_call.1} parent=1 // pred_region
      %22 = vsyncadd [#allocation5], 0
      %s23 = sshll.u32 %s0, 4
      %s24 = int_to_ptr.hbm [resolvable:$true] %s23
      %s25 = sshll.u32 [#allocation4], 4
      %s26 = int_to_ptr.vmem [resolvable:$true] %s25
      %31 = dma.hbm_to_vmem [thread:$0]  %s24, 1024, %s26, [#allocation5], 128, 128, 8
    $region5: #{tpu_custom_call.1} parent=1 // pred_fallthru
      _
    // Predicated region
    $region6: #{tpu_custom_call.1} parent=1 // pred_check
      _
    $region7: #{tpu_custom_call.1} parent=1 // pred_check_branch
      %33 = sbr.rel (0) target = $region9
    $region8: #{tpu_custom_call.1} parent=1 // pred_region
      %35 = vsyncadd [#allocation8], 0
      %s36 = sshll.u32 %s1, 4
      %s37 = int_to_ptr.hbm [resolvable:$true] %s36
      %s38 = sshll.u32 [#allocation7], 4
      %s39 = int_to_ptr.vmem [resolvable:$true] %s38
      %44 = dma.hbm_to_vmem [thread:$0]  %s37, 12288, %s39, [#allocation8], 768, 768, 48
    $region9: #{tpu_custom_call.1} parent=1 // pred_fallthru
      _
    // Predicated region
    $region10: #{tpu_custom_call.1} parent=1 // pred_check
      _
    $region11: #{tpu_custom_call.1} parent=1 // pred_check_branch
      %46 = sbr.rel (0) target = $region13
    $region12: #{tpu_custom_call.1} parent=1 // pred_region
      %48 = vsyncadd [#allocation8], 0
      %s49 = sshll.u32 %s2, 4
      %s50 = int_to_ptr.hbm [resolvable:$true] %s49
      %s51 = sshll.u32 [#allocation9], 4
      %s52 = int_to_ptr.vmem [resolvable:$true] %s51
      %57 = dma.hbm_to_vmem [thread:$0]  %s50, 6144, %s52, [#allocation8], 384, 384, 24
    $region13: #{tpu_custom_call.1} parent=1 // pred_fallthru
      _
    // Predicated region
    $region14: #{tpu_custom_call.1} parent=1 // pred_check
      _
    $region15: #{tpu_custom_call.1} parent=1 // pred_check_branch
      %59 = sbr.rel (0) target = $region17
    $region16: #{tpu_custom_call.1} parent=1 // pred_region
      %61 = vsyncadd [#allocation11], 0
      %s63 = sshll.u32 %s3, 4
      %s64 = int_to_ptr.hbm [resolvable:$true] %s63
      %s65 = sshll.u32 [#allocation10], 4
      %s66 = int_to_ptr.vmem [resolvable:$true] %s65
      %68 = dma.hbm_to_vmem [thread:$0]  %s64, 96, %s66, [#allocation11]
    $region17: #{tpu_custom_call.1} parent=1 // pred_fallthru
      _
    // Predicated region
    $region18: #{tpu_custom_call.1} parent=1 // pred_check
      _
    $region19: #{tpu_custom_call.1} parent=1 // pred_check_branch
      %70 = sbr.rel (0) target = $region21
    $region20: #{tpu_custom_call.1} parent=1 // pred_region
      _
    $region21: #{tpu_custom_call.1} parent=1 // pred_fallthru
      _
    // Predicated region
    $region22: #{tpu_custom_call.1} parent=1 // pred_check
      _
    $region23: #{tpu_custom_call.1} parent=1 // pred_check_branch
      %72 = sbr.rel (0) target = $region25
    $region24: #{tpu_custom_call.1} parent=1 // pred_region
      _
    $region25: #{tpu_custom_call.1} parent=1 // pred_fallthru
      _
    // Predicated region
    $region26: #{tpu_custom_call.1} parent=1 // pred_check
      _
    $region27: #{tpu_custom_call.1} parent=1 // pred_check_branch
      %74 = sbr.rel (0) target = $region29
    $region28: #{tpu_custom_call.1} parent=1 // pred_region
      %76 = vsyncadd [#allocation11], 0
      %s77 = sshll.u32 %s6, 4
      %s78 = int_to_ptr.hbm [resolvable:$true] %s77
      %s79 = sshll.u32 [#allocation12], 4
      %s80 = int_to_ptr.vmem [resolvable:$true] %s79
      %85 = dma.hbm_to_vmem [thread:$0]  %s78, 2048, %s80, [#allocation11], 128, 128, 8
    $region29: #{tpu_custom_call.1} parent=1 // pred_fallthru
      _
    // Predicated region
    $region30: #{tpu_custom_call.1} parent=1 // pred_check
      _
    $region31: #{tpu_custom_call.1} parent=1 // pred_check_branch
      %87 = sbr.rel (0) target = $region33
    $region32: #{tpu_custom_call.1} parent=1 // pred_region
      %89 = vsyncadd [#allocation14], 0
      %s90 = sshll.u32 %s7, 4
      %s91 = int_to_ptr.hbm [resolvable:$true] %s90
      %s92 = sshll.u32 [#allocation13], 4
      %s93 = int_to_ptr.vmem [resolvable:$true] %s92
      %98 = dma.hbm_to_vmem [thread:$0]  %s91, 2048, %s93, [#allocation14], 128, 128, 8
    $region33: #{tpu_custom_call.1} parent=1 // pred_fallthru
      _
    // Predicated region
    $region34: #{tpu_custom_call.1} parent=1 // pred_check
      _
    $region35: #{tpu_custom_call.1} parent=1 // pred_check_branch
      %100 = sbr.rel (0) target = $region37
    $region36: #{tpu_custom_call.1} parent=1 // pred_region
      _
    $region37: #{tpu_custom_call.1} parent=1 // pred_fallthru
      _
    // Predicated region
    $region38: #{tpu_custom_call.1} parent=1 // pred_check
      _
    $region39: #{tpu_custom_call.1} parent=1 // pred_check_branch
      %102 = sbr.rel (0) target = $region41
    $region40: #{tpu_custom_call.1} parent=1 // pred_region
      %104 = dma.done [#allocation5], 1024
    $region41: #{tpu_custom_call.1} parent=1 // pred_fallthru
      _
    // Predicated region
    $region42: #{tpu_custom_call.1} parent=1 // pred_check
      _
    $region43: #{tpu_custom_call.1} parent=1 // pred_check_branch
      %106 = sbr.rel (0) target = $region45
    $region44: #{tpu_custom_call.1} parent=1 // pred_region
      %108 = dma.done [#allocation8], 12288
    $region45: #{tpu_custom_call.1} parent=1 // pred_fallthru
      _
    // Predicated region
    $region46: #{tpu_custom_call.1} parent=1 // pred_check
      _
    $region47: #{tpu_custom_call.1} parent=1 // pred_check_branch
      %110 = sbr.rel (0) target = $region49
    $region48: #{tpu_custom_call.1} parent=1 // pred_region
      %112 = dma.done [#allocation8], 6144
    $region49: #{tpu_custom_call.1} parent=1 // pred_fallthru
      _
    // Predicated region
    $region50: #{tpu_custom_call.1} parent=1 // pred_check
      _
    $region51: #{tpu_custom_call.1} parent=1 // pred_check_branch
      %114 = sbr.rel (0) target = $region53
    $region52: #{tpu_custom_call.1} parent=1 // pred_region
      %116 = dma.done [#allocation11], 96
    $region53: #{tpu_custom_call.1} parent=1 // pred_fallthru
      _
    // Predicated region
    $region54: #{tpu_custom_call.1} parent=1 // pred_check
      _
    $region55: #{tpu_custom_call.1} parent=1 // pred_check_branch
      %118 = sbr.rel (0) target = $region57
    $region56: #{tpu_custom_call.1} parent=1 // pred_region
      %120 = dma.done [#allocation11], 2048
    $region57: #{tpu_custom_call.1} parent=1 // pred_fallthru
      _
    // Predicated region
    $region58: #{tpu_custom_call.1} parent=1 // pred_check
      _
    $region59: #{tpu_custom_call.1} parent=1 // pred_check_branch
      %122 = sbr.rel (0) target = $region61
    $region60: #{tpu_custom_call.1} parent=1 // pred_region
      %124 = dma.done [#allocation14], 2048
    $region61: #{tpu_custom_call.1} parent=1 // pred_fallthru
      _
    %p125 = scmp.eq.s32.totalorder 0, 0
    // Predicated region
    $region62: #{tpu_custom_call.1} parent=1 // pred_check
      %p126 = pneg %p125
    $region63: #{tpu_custom_call.1} parent=1 // pred_check_branch
      %128 = sbr.rel (%p126) target = $region65
    $region64: #{tpu_custom_call.1} parent=1 // pred_region
      %129 = vst [vmem:[#allocation2] sm:$0xff] 0.0
    $region65: #{tpu_custom_call.1} parent=1 // pred_fallthru
      _
    %v130 = vld [vmem:[#allocation4] sm:$0xff]
    %v131 = vld [vmem:[#allocation4 + $0x8] sm:$0xff]
    %v132 = vld [vmem:[#allocation4 + $0x10] sm:$0xff]
    %v133 = vld [vmem:[#allocation4 + $0x18] sm:$0xff]
    %v134 = vld [vmem:[#allocation4 + $0x20] sm:$0xff]
    %v135 = vld [vmem:[#allocation4 + $0x28] sm:$0xff]
    %v136 = vld [vmem:[#allocation4 + $0x30] sm:$0xff]
    %v137 = vld [vmem:[#allocation4 + $0x38] sm:$0xff]
    %v138 = vld [vmem:[#allocation7] sm:$0xff]
    %v139 = vld [vmem:[#allocation7 + $0x8] sm:$0xff]
    %v140 = vld [vmem:[#allocation7 + $0x10] sm:$0xff]
    %v141 = vld [vmem:[#allocation7 + $0x18] sm:$0xff]
    %v142 = vld [vmem:[#allocation7 + $0x20] sm:$0xff]
    %v143 = vld [vmem:[#allocation7 + $0x28] sm:$0xff]
    %v144 = vld [vmem:[#allocation7 + $0x30] sm:$0xff]
    %v145 = vld [vmem:[#allocation7 + $0x38] sm:$0xff]
    %v146 = vld [vmem:[#allocation7 + $0x40] sm:$0xff]
    %v147 = vld [vmem:[#allocation7 + $0x48] sm:$0xff]
    %v148 = vld [vmem:[#allocation7 + $0x50] sm:$0xff]
    %v149 = vld [vmem:[#allocation7 + $0x58] sm:$0xff]
    %v150 = vld [vmem:[#allocation7 + $0x60] sm:$0xff]
    %v151 = vld [vmem:[#allocation7 + $0x68] sm:$0xff]
    %v152 = vld [vmem:[#allocation7 + $0x70] sm:$0xff]
    %v153 = vld [vmem:[#allocation7 + $0x78] sm:$0xff]
    %v154 = vld [vmem:[#allocation7 + $0x80] sm:$0xff]
    %v155 = vld [vmem:[#allocation7 + $0x88] sm:$0xff]
    %v156 = vld [vmem:[#allocation7 + $0x90] sm:$0xff]
    %v157 = vld [vmem:[#allocation7 + $0x98] sm:$0xff]
    %v158 = vld [vmem:[#allocation7 + $0xa0] sm:$0xff]
    %v159 = vld [vmem:[#allocation7 + $0xa8] sm:$0xff]
    %v160 = vld [vmem:[#allocation7 + $0xb0] sm:$0xff]
    %v161 = vld [vmem:[#allocation7 + $0xb8] sm:$0xff]
    %v162 = vld [vmem:[#allocation7 + $0xc0] sm:$0xff]
    %v163 = vld [vmem:[#allocation7 + $0xc8] sm:$0xff]
    %v164 = vld [vmem:[#allocation7 + $0xd0] sm:$0xff]
    %v165 = vld [vmem:[#allocation7 + $0xd8] sm:$0xff]
    %v166 = vld [vmem:[#allocation7 + $0xe0] sm:$0xff]
    %v167 = vld [vmem:[#allocation7 + $0xe8] sm:$0xff]
    %v168 = vld [vmem:[#allocation7 + $0xf0] sm:$0xff]
    %v169 = vld [vmem:[#allocation7 + $0xf8] sm:$0xff]
    %v170 = vld [vmem:[#allocation7 + $0x100] sm:$0xff]
    %v171 = vld [vmem:[#allocation7 + $0x108] sm:$0xff]
    %v172 = vld [vmem:[#allocation7 + $0x110] sm:$0xff]
    %v173 = vld [vmem:[#allocation7 + $0x118] sm:$0xff]
    %v174 = vld [vmem:[#allocation7 + $0x120] sm:$0xff]
    %v175 = vld [vmem:[#allocation7 + $0x128] sm:$0xff]
    %v176 = vld [vmem:[#allocation7 + $0x130] sm:$0xff]
    %v177 = vld [vmem:[#allocation7 + $0x138] sm:$0xff]
    %v178 = vld [vmem:[#allocation7 + $0x140] sm:$0xff]
    %v179 = vld [vmem:[#allocation7 + $0x148] sm:$0xff]
    %v180 = vld [vmem:[#allocation7 + $0x150] sm:$0xff]
    %v181 = vld [vmem:[#allocation7 + $0x158] sm:$0xff]
    %v182 = vld [vmem:[#allocation7 + $0x160] sm:$0xff]
    %v183 = vld [vmem:[#allocation7 + $0x168] sm:$0xff]
    %v184 = vld [vmem:[#allocation7 + $0x170] sm:$0xff]
    %v185 = vld [vmem:[#allocation7 + $0x178] sm:$0xff]
    %v186 = vld [vmem:[#allocation7 + $0x180] sm:$0xff]
    %v187 = vld [vmem:[#allocation7 + $0x188] sm:$0xff]
    %v188 = vld [vmem:[#allocation7 + $0x190] sm:$0xff]
    %v189 = vld [vmem:[#allocation7 + $0x198] sm:$0xff]
    %v190 = vld [vmem:[#allocation7 + $0x1a0] sm:$0xff]
    %v191 = vld [vmem:[#allocation7 + $0x1a8] sm:$0xff]
    %v192 = vld [vmem:[#allocation7 + $0x1b0] sm:$0xff]
    %v193 = vld [vmem:[#allocation7 + $0x1b8] sm:$0xff]
    %v194 = vld [vmem:[#allocation7 + $0x1c0] sm:$0xff]
    %v195 = vld [vmem:[#allocation7 + $0x1c8] sm:$0xff]
    %v196 = vld [vmem:[#allocation7 + $0x1d0] sm:$0xff]
    %v197 = vld [vmem:[#allocation7 + $0x1d8] sm:$0xff]
    %v198 = vld [vmem:[#allocation7 + $0x1e0] sm:$0xff]
    %v199 = vld [vmem:[#allocation7 + $0x1e8] sm:$0xff]
    %v200 = vld [vmem:[#allocation7 + $0x1f0] sm:$0xff]
    %v201 = vld [vmem:[#allocation7 + $0x1f8] sm:$0xff]
    %v202 = vld [vmem:[#allocation7 + $0x200] sm:$0xff]
    %v203 = vld [vmem:[#allocation7 + $0x208] sm:$0xff]
    %v204 = vld [vmem:[#allocation7 + $0x210] sm:$0xff]
    %v205 = vld [vmem:[#allocation7 + $0x218] sm:$0xff]
    %v206 = vld [vmem:[#allocation7 + $0x220] sm:$0xff]
    %v207 = vld [vmem:[#allocation7 + $0x228] sm:$0xff]
    %v208 = vld [vmem:[#allocation7 + $0x230] sm:$0xff]
    %v209 = vld [vmem:[#allocation7 + $0x238] sm:$0xff]
    %v210 = vld [vmem:[#allocation7 + $0x240] sm:$0xff]
    %v211 = vld [vmem:[#allocation7 + $0x248] sm:$0xff]
    %v212 = vld [vmem:[#allocation7 + $0x250] sm:$0xff]
    %v213 = vld [vmem:[#allocation7 + $0x258] sm:$0xff]
    %v214 = vld [vmem:[#allocation7 + $0x260] sm:$0xff]
    %v215 = vld [vmem:[#allocation7 + $0x268] sm:$0xff]
    %v216 = vld [vmem:[#allocation7 + $0x270] sm:$0xff]
    %v217 = vld [vmem:[#allocation7 + $0x278] sm:$0xff]
    %v218 = vld [vmem:[#allocation7 + $0x280] sm:$0xff]
    %v219 = vld [vmem:[#allocation7 + $0x288] sm:$0xff]
    %v220 = vld [vmem:[#allocation7 + $0x290] sm:$0xff]
    %v221 = vld [vmem:[#allocation7 + $0x298] sm:$0xff]
    %v222 = vld [vmem:[#allocation7 + $0x2a0] sm:$0xff]
    %v223 = vld [vmem:[#allocation7 + $0x2a8] sm:$0xff]
    %v224 = vld [vmem:[#allocation7 + $0x2b0] sm:$0xff]
    %v225 = vld [vmem:[#allocation7 + $0x2b8] sm:$0xff]
    %v226 = vld [vmem:[#allocation7 + $0x2c0] sm:$0xff]
    %v227 = vld [vmem:[#allocation7 + $0x2c8] sm:$0xff]
    %v228 = vld [vmem:[#allocation7 + $0x2d0] sm:$0xff]
    %v229 = vld [vmem:[#allocation7 + $0x2d8] sm:$0xff]
    %v230 = vld [vmem:[#allocation7 + $0x2e0] sm:$0xff]
    %v231 = vld [vmem:[#allocation7 + $0x2e8] sm:$0xff]
    %v232 = vld [vmem:[#allocation7 + $0x2f0] sm:$0xff]
    %v233 = vld [vmem:[#allocation7 + $0x2f8] sm:$0xff]
    %v234 = vld [vmem:[#allocation10] sm:$0x3f]
    %v236 = vperm.slane %v234, 0
    %v237 = vperm.slane %v234, 1
    %v238 = vperm.slane %v234, 2
    %v239 = vperm.slane %v234, 3
    %v240 = vperm.slane %v234, 4
    %v241 = vperm.slane %v234, 5
    %248 = vmatpush.msra.mxu0 %v228
    %249 = vmatpush.msra.mxu0 %v222
    %250 = vmatpush.msra.mxu0 %v216
    %251 = vmatpush.msra.mxu0 %v210
    %252 = vmatpush.msra.mxu0 %v204
    %253 = vmatpush.msra.mxu0 %v198
    %254 = vmatpush.msra.mxu0 %v192
    %255 = vmatpush.msra.mxu0 %v186
    %256 = vmatpush.msra.mxu0 %v180
    %257 = vmatpush.msra.mxu0 %v174
    %258 = vmatpush.msra.mxu0 %v168
    %259 = vmatpush.msra.mxu0 %v162
    %260 = vmatpush.msra.mxu0 %v156
    %261 = vmatpush.msra.mxu0 %v150
    %262 = vmatpush.msra.mxu0 %v144
    %263 = vmatpush.msra.mxu0 %v138
    %264 = vmatmul.f32.gmra.mxu0 %v130
    %v265 = vpop.f32.mrf.mxu0
    %v266 = vadd.f32 %v236, %v265
    %267 = vmatmul.f32.gmra.mxu0 %v131
    %v268 = vpop.f32.mrf.mxu0
    %v269 = vadd.f32 %v236, %v268
    %270 = vmatmul.f32.gmra.mxu0 %v132
    %v271 = vpop.f32.mrf.mxu0
    %v272 = vadd.f32 %v236, %v271
    %273 = vmatmul.f32.gmra.mxu0 %v133
    %v274 = vpop.f32.mrf.mxu0
    %v275 = vadd.f32 %v236, %v274
    %276 = vmatmul.f32.gmra.mxu0 %v134
    %v277 = vpop.f32.mrf.mxu0
    %v278 = vadd.f32 %v236, %v277
    %279 = vmatmul.f32.gmra.mxu0 %v135
    %v280 = vpop.f32.mrf.mxu0
    %v281 = vadd.f32 %v236, %v280
    %282 = vmatmul.f32.gmra.mxu0 %v136
    %v283 = vpop.f32.mrf.mxu0
    %v284 = vadd.f32 %v236, %v283
    %285 = vmatmul.f32.gmra.mxu0 %v137
    %v286 = vpop.f32.mrf.mxu0
    %v287 = vadd.f32 %v236, %v286
    %288 = vdwg.mxu0
    %289 = vmatpush.msra.mxu0 %v229
    %290 = vmatpush.msra.mxu0 %v223
    %291 = vmatpush.msra.mxu0 %v217
    %292 = vmatpush.msra.mxu0 %v211
    %293 = vmatpush.msra.mxu0 %v205
    %294 = vmatpush.msra.mxu0 %v199
    %295 = vmatpush.msra.mxu0 %v193
    %296 = vmatpush.msra.mxu0 %v187
    %297 = vmatpush.msra.mxu0 %v181
    %298 = vmatpush.msra.mxu0 %v175
    %299 = vmatpush.msra.mxu0 %v169
    %300 = vmatpush.msra.mxu0 %v163
    %301 = vmatpush.msra.mxu0 %v157
    %302 = vmatpush.msra.mxu0 %v151
    %303 = vmatpush.msra.mxu0 %v145
    %304 = vmatpush.msra.mxu0 %v139
    %305 = vmatmul.f32.gmra.mxu0 %v130
    %v306 = vpop.f32.mrf.mxu0
    %v307 = vadd.f32 %v237, %v306
    %308 = vmatmul.f32.gmra.mxu0 %v131
    %v309 = vpop.f32.mrf.mxu0
    %v310 = vadd.f32 %v237, %v309
    %311 = vmatmul.f32.gmra.mxu0 %v132
    %v312 = vpop.f32.mrf.mxu0
    %v313 = vadd.f32 %v237, %v312
    %314 = vmatmul.f32.gmra.mxu0 %v133
    %v315 = vpop.f32.mrf.mxu0
    %v316 = vadd.f32 %v237, %v315
    %317 = vmatmul.f32.gmra.mxu0 %v134
    %v318 = vpop.f32.mrf.mxu0
    %v319 = vadd.f32 %v237, %v318
    %320 = vmatmul.f32.gmra.mxu0 %v135
    %v321 = vpop.f32.mrf.mxu0
    %v322 = vadd.f32 %v237, %v321
    %323 = vmatmul.f32.gmra.mxu0 %v136
    %v324 = vpop.f32.mrf.mxu0
    %v325 = vadd.f32 %v237, %v324
    %326 = vmatmul.f32.gmra.mxu0 %v137
    %v327 = vpop.f32.mrf.mxu0
    %v328 = vadd.f32 %v237, %v327
    %329 = vdwg.mxu0
    %330 = vmatpush.msra.mxu0 %v230
    %331 = vmatpush.msra.mxu0 %v224
    %332 = vmatpush.msra.mxu0 %v218
    %333 = vmatpush.msra.mxu0 %v212
    %334 = vmatpush.msra.mxu0 %v206
    %335 = vmatpush.msra.mxu0 %v200
    %336 = vmatpush.msra.mxu0 %v194
    %337 = vmatpush.msra.mxu0 %v188
    %338 = vmatpush.msra.mxu0 %v182
    %339 = vmatpush.msra.mxu0 %v176
    %340 = vmatpush.msra.mxu0 %v170
    %341 = vmatpush.msra.mxu0 %v164
    %342 = vmatpush.msra.mxu0 %v158
    %343 = vmatpush.msra.mxu0 %v152
    %344 = vmatpush.msra.mxu0 %v146
    %345 = vmatpush.msra.mxu0 %v140
    %346 = vmatmul.f32.gmra.mxu0 %v130
    %v347 = vpop.f32.mrf.mxu0
    %v348 = vadd.f32 %v238, %v347
    %349 = vmatmul.f32.gmra.mxu0 %v131
    %v350 = vpop.f32.mrf.mxu0
    %v351 = vadd.f32 %v238, %v350
    %352 = vmatmul.f32.gmra.mxu0 %v132
    %v353 = vpop.f32.mrf.mxu0
    %v354 = vadd.f32 %v238, %v353
    %355 = vmatmul.f32.gmra.mxu0 %v133
    %v356 = vpop.f32.mrf.mxu0
    %v357 = vadd.f32 %v238, %v356
    %358 = vmatmul.f32.gmra.mxu0 %v134
    %v359 = vpop.f32.mrf.mxu0
    %v360 = vadd.f32 %v238, %v359
    %361 = vmatmul.f32.gmra.mxu0 %v135
    %v362 = vpop.f32.mrf.mxu0
    %v363 = vadd.f32 %v238, %v362
    %364 = vmatmul.f32.gmra.mxu0 %v136
    %v365 = vpop.f32.mrf.mxu0
    %v366 = vadd.f32 %v238, %v365
    %367 = vmatmul.f32.gmra.mxu0 %v137
    %v368 = vpop.f32.mrf.mxu0
    %v369 = vadd.f32 %v238, %v368
    %370 = vdwg.mxu0
    %371 = vmatpush.msra.mxu0 %v231
    %372 = vmatpush.msra.mxu0 %v225
    %373 = vmatpush.msra.mxu0 %v219
    %374 = vmatpush.msra.mxu0 %v213
    %375 = vmatpush.msra.mxu0 %v207
    %376 = vmatpush.msra.mxu0 %v201
    %377 = vmatpush.msra.mxu0 %v195
    %378 = vmatpush.msra.mxu0 %v189
    %379 = vmatpush.msra.mxu0 %v183
    %380 = vmatpush.msra.mxu0 %v177
    %381 = vmatpush.msra.mxu0 %v171
    %382 = vmatpush.msra.mxu0 %v165
    %383 = vmatpush.msra.mxu0 %v159
    %384 = vmatpush.msra.mxu0 %v153
    %385 = vmatpush.msra.mxu0 %v147
    %386 = vmatpush.msra.mxu0 %v141
    %387 = vmatmul.f32.gmra.mxu0 %v130
    %v388 = vpop.f32.mrf.mxu0
    %v389 = vadd.f32 %v239, %v388
    %390 = vmatmul.f32.gmra.mxu0 %v131
    %v391 = vpop.f32.mrf.mxu0
    %v392 = vadd.f32 %v239, %v391
    %393 = vmatmul.f32.gmra.mxu0 %v132
    %v394 = vpop.f32.mrf.mxu0
    %v395 = vadd.f32 %v239, %v394
    %396 = vmatmul.f32.gmra.mxu0 %v133
    %v397 = vpop.f32.mrf.mxu0
    %v398 = vadd.f32 %v239, %v397
    %399 = vmatmul.f32.gmra.mxu0 %v134
    %v400 = vpop.f32.mrf.mxu0
    %v401 = vadd.f32 %v239, %v400
    %402 = vmatmul.f32.gmra.mxu0 %v135
    %v403 = vpop.f32.mrf.mxu0
    %v404 = vadd.f32 %v239, %v403
    %405 = vmatmul.f32.gmra.mxu0 %v136
    %v406 = vpop.f32.mrf.mxu0
    %v407 = vadd.f32 %v239, %v406
    %408 = vmatmul.f32.gmra.mxu0 %v137
    %v409 = vpop.f32.mrf.mxu0
    %v410 = vadd.f32 %v239, %v409
    %411 = vdwg.mxu0
    %412 = vmatpush.msra.mxu0 %v232
    %413 = vmatpush.msra.mxu0 %v226
    %414 = vmatpush.msra.mxu0 %v220
    %415 = vmatpush.msra.mxu0 %v214
    %416 = vmatpush.msra.mxu0 %v208
    %417 = vmatpush.msra.mxu0 %v202
    %418 = vmatpush.msra.mxu0 %v196
    %419 = vmatpush.msra.mxu0 %v190
    %420 = vmatpush.msra.mxu0 %v184
    %421 = vmatpush.msra.mxu0 %v178
    %422 = vmatpush.msra.mxu0 %v172
    %423 = vmatpush.msra.mxu0 %v166
    %424 = vmatpush.msra.mxu0 %v160
    %425 = vmatpush.msra.mxu0 %v154
    %426 = vmatpush.msra.mxu0 %v148
    %427 = vmatpush.msra.mxu0 %v142
    %428 = vmatmul.f32.gmra.mxu0 %v130
    %v429 = vpop.f32.mrf.mxu0
    %v430 = vadd.f32 %v240, %v429
    %431 = vmatmul.f32.gmra.mxu0 %v131
    %v432 = vpop.f32.mrf.mxu0
    %v433 = vadd.f32 %v240, %v432
    %434 = vmatmul.f32.gmra.mxu0 %v132
    %v435 = vpop.f32.mrf.mxu0
    %v436 = vadd.f32 %v240, %v435
    %437 = vmatmul.f32.gmra.mxu0 %v133
    %v438 = vpop.f32.mrf.mxu0
    %v439 = vadd.f32 %v240, %v438
    %440 = vmatmul.f32.gmra.mxu0 %v134
    %v441 = vpop.f32.mrf.mxu0
    %v442 = vadd.f32 %v240, %v441
    %443 = vmatmul.f32.gmra.mxu0 %v135
    %v444 = vpop.f32.mrf.mxu0
    %v445 = vadd.f32 %v240, %v444
    %446 = vmatmul.f32.gmra.mxu0 %v136
    %v447 = vpop.f32.mrf.mxu0
    %v448 = vadd.f32 %v240, %v447
    %449 = vmatmul.f32.gmra.mxu0 %v137
    %v450 = vpop.f32.mrf.mxu0
    %v451 = vadd.f32 %v240, %v450
    %452 = vdwg.mxu0
    %453 = vmatpush.msra.mxu0 %v233
    %454 = vmatpush.msra.mxu0 %v227
    %455 = vmatpush.msra.mxu0 %v221
    %456 = vmatpush.msra.mxu0 %v215
    %457 = vmatpush.msra.mxu0 %v209
    %458 = vmatpush.msra.mxu0 %v203
    %459 = vmatpush.msra.mxu0 %v197
    %460 = vmatpush.msra.mxu0 %v191
    %461 = vmatpush.msra.mxu0 %v185
    %462 = vmatpush.msra.mxu0 %v179
    %463 = vmatpush.msra.mxu0 %v173
    %464 = vmatpush.msra.mxu0 %v167
    %465 = vmatpush.msra.mxu0 %v161
    %466 = vmatpush.msra.mxu0 %v155
    %467 = vmatpush.msra.mxu0 %v149
    %468 = vmatpush.msra.mxu0 %v143
    %469 = vmatmul.f32.gmra.mxu0 %v130
    %v470 = vpop.f32.mrf.mxu0
    %v471 = vadd.f32 %v241, %v470
    %472 = vmatmul.f32.gmra.mxu0 %v131
    %v473 = vpop.f32.mrf.mxu0
    %v474 = vadd.f32 %v241, %v473
    %475 = vmatmul.f32.gmra.mxu0 %v132
    %v476 = vpop.f32.mrf.mxu0
    %v477 = vadd.f32 %v241, %v476
    %478 = vmatmul.f32.gmra.mxu0 %v133
    %v479 = vpop.f32.mrf.mxu0
    %v480 = vadd.f32 %v241, %v479
    %481 = vmatmul.f32.gmra.mxu0 %v134
    %v482 = vpop.f32.mrf.mxu0
    %v483 = vadd.f32 %v241, %v482
    %484 = vmatmul.f32.gmra.mxu0 %v135
    %v485 = vpop.f32.mrf.mxu0
    %v486 = vadd.f32 %v241, %v485
    %487 = vmatmul.f32.gmra.mxu0 %v136
    %v488 = vpop.f32.mrf.mxu0
    %v489 = vadd.f32 %v241, %v488
    %490 = vmatmul.f32.gmra.mxu0 %v137
    %v491 = vpop.f32.mrf.mxu0
    %v492 = vadd.f32 %v241, %v491
    %493 = vdwg.mxu0
    %494 = vst [vmem:[#allocation3] sm:$0xff] %v266
    %495 = vst [vmem:[#allocation3 + $0x8] sm:$0xff] %v307
    %496 = vst [vmem:[#allocation3 + $0x10] sm:$0xff] %v348
    %497 = vst [vmem:[#allocation3 + $0x18] sm:$0xff] %v389
    %498 = vst [vmem:[#allocation3 + $0x20] sm:$0xff] %v430
    %499 = vst [vmem:[#allocation3 + $0x28] sm:$0xff] %v471
    %500 = vst [vmem:[#allocation3 + $0x30] sm:$0xff] %v269
    %501 = vst [vmem:[#allocation3 + $0x38] sm:$0xff] %v310
    %502 = vst [vmem:[#allocation3 + $0x40] sm:$0xff] %v351
    %503 = vst [vmem:[#allocation3 + $0x48] sm:$0xff] %v392
    %504 = vst [vmem:[#allocation3 + $0x50] sm:$0xff] %v433
    %505 = vst [vmem:[#allocation3 + $0x58] sm:$0xff] %v474
    %506 = vst [vmem:[#allocation3 + $0x60] sm:$0xff] %v272
    %507 = vst [vmem:[#allocation3 + $0x68] sm:$0xff] %v313
    %508 = vst [vmem:[#allocation3 + $0x70] sm:$0xff] %v354
    %509 = vst [vmem:[#allocation3 + $0x78] sm:$0xff] %v395
    %510 = vst [vmem:[#allocation3 + $0x80] sm:$0xff] %v436
    %511 = vst [vmem:[#allocation3 + $0x88] sm:$0xff] %v477
    %512 = vst [vmem:[#allocation3 + $0x90] sm:$0xff] %v275
    %513 = vst [vmem:[#allocation3 + $0x98] sm:$0xff] %v316
    %514 = vst [vmem:[#allocation3 + $0xa0] sm:$0xff] %v357
    %515 = vst [vmem:[#allocation3 + $0xa8] sm:$0xff] %v398
    %516 = vst [vmem:[#allocation3 + $0xb0] sm:$0xff] %v439
    %517 = vst [vmem:[#allocation3 + $0xb8] sm:$0xff] %v480
    %518 = vst [vmem:[#allocation3 + $0xc0] sm:$0xff] %v278
    %519 = vst [vmem:[#allocation3 + $0xc8] sm:$0xff] %v319
    %520 = vst [vmem:[#allocation3 + $0xd0] sm:$0xff] %v360
    %521 = vst [vmem:[#allocation3 + $0xd8] sm:$0xff] %v401
    %522 = vst [vmem:[#allocation3 + $0xe0] sm:$0xff] %v442
    %523 = vst [vmem:[#allocation3 + $0xe8] sm:$0xff] %v483
    %524 = vst [vmem:[#allocation3 + $0xf0] sm:$0xff] %v281
    %525 = vst [vmem:[#allocation3 + $0xf8] sm:$0xff] %v322
    %526 = vst [vmem:[#allocation3 + $0x100] sm:$0xff] %v363
    %527 = vst [vmem:[#allocation3 + $0x108] sm:$0xff] %v404
    %528 = vst [vmem:[#allocation3 + $0x110] sm:$0xff] %v445
    %529 = vst [vmem:[#allocation3 + $0x118] sm:$0xff] %v486
    %530 = vst [vmem:[#allocation3 + $0x120] sm:$0xff] %v284
    %531 = vst [vmem:[#allocation3 + $0x128] sm:$0xff] %v325
    %532 = vst [vmem:[#allocation3 + $0x130] sm:$0xff] %v366
    %533 = vst [vmem:[#allocation3 + $0x138] sm:$0xff] %v407
    %534 = vst [vmem:[#allocation3 + $0x140] sm:$0xff] %v448
    %535 = vst [vmem:[#allocation3 + $0x148] sm:$0xff] %v489
    %536 = vst [vmem:[#allocation3 + $0x150] sm:$0xff] %v287
    %537 = vst [vmem:[#allocation3 + $0x158] sm:$0xff] %v328
    %538 = vst [vmem:[#allocation3 + $0x160] sm:$0xff] %v369
    %539 = vst [vmem:[#allocation3 + $0x168] sm:$0xff] %v410
    %540 = vst [vmem:[#allocation3 + $0x170] sm:$0xff] %v451
    %541 = vst [vmem:[#allocation3 + $0x178] sm:$0xff] %v492
    %v542 = vld [vmem:[#allocation9] sm:$0xff]
    %v543 = vld [vmem:[#allocation9 + $0x8] sm:$0xff]
    %v544 = vld [vmem:[#allocation9 + $0x10] sm:$0xff]
    %v545 = vld [vmem:[#allocation9 + $0x18] sm:$0xff]
    %v546 = vld [vmem:[#allocation9 + $0x20] sm:$0xff]
    %v547 = vld [vmem:[#allocation9 + $0x28] sm:$0xff]
    %v548 = vld [vmem:[#allocation9 + $0x30] sm:$0xff]
    %v549 = vld [vmem:[#allocation9 + $0x38] sm:$0xff]
    %v550 = vld [vmem:[#allocation9 + $0x40] sm:$0xff]
    %v551 = vld [vmem:[#allocation9 + $0x48] sm:$0xff]
    %v552 = vld [vmem:[#allocation9 + $0x50] sm:$0xff]
    %v553 = vld [vmem:[#allocation9 + $0x58] sm:$0xff]
    %v554 = vld [vmem:[#allocation9 + $0x60] sm:$0xff]
    %v555 = vld [vmem:[#allocation9 + $0x68] sm:$0xff]
    %v556 = vld [vmem:[#allocation9 + $0x70] sm:$0xff]
    %v557 = vld [vmem:[#allocation9 + $0x78] sm:$0xff]
    %v558 = vld [vmem:[#allocation9 + $0x80] sm:$0xff]
    %v559 = vld [vmem:[#allocation9 + $0x88] sm:$0xff]
    %v560 = vld [vmem:[#allocation9 + $0x90] sm:$0xff]
    %v561 = vld [vmem:[#allocation9 + $0x98] sm:$0xff]
    %v562 = vld [vmem:[#allocation9 + $0xa0] sm:$0xff]
    %v563 = vld [vmem:[#allocation9 + $0xa8] sm:$0xff]
    %v564 = vld [vmem:[#allocation9 + $0xb0] sm:$0xff]
    %v565 = vld [vmem:[#allocation9 + $0xb8] sm:$0xff]
    %v566 = vld [vmem:[#allocation9 + $0xc0] sm:$0xff]
    %v567 = vld [vmem:[#allocation9 + $0xc8] sm:$0xff]
    %v568 = vld [vmem:[#allocation9 + $0xd0] sm:$0xff]
    %v569 = vld [vmem:[#allocation9 + $0xd8] sm:$0xff]
    %v570 = vld [vmem:[#allocation9 + $0xe0] sm:$0xff]
    %v571 = vld [vmem:[#allocation9 + $0xe8] sm:$0xff]
    %v572 = vld [vmem:[#allocation9 + $0xf0] sm:$0xff]
    %v573 = vld [vmem:[#allocation9 + $0xf8] sm:$0xff]
    %v574 = vld [vmem:[#allocation9 + $0x100] sm:$0xff]
    %v575 = vld [vmem:[#allocation9 + $0x108] sm:$0xff]
    %v576 = vld [vmem:[#allocation9 + $0x110] sm:$0xff]
    %v577 = vld [vmem:[#allocation9 + $0x118] sm:$0xff]
    %v578 = vld [vmem:[#allocation9 + $0x120] sm:$0xff]
    %v579 = vld [vmem:[#allocation9 + $0x128] sm:$0xff]
    %v580 = vld [vmem:[#allocation9 + $0x130] sm:$0xff]
    %v581 = vld [vmem:[#allocation9 + $0x138] sm:$0xff]
    %v582 = vld [vmem:[#allocation9 + $0x140] sm:$0xff]
    %v583 = vld [vmem:[#allocation9 + $0x148] sm:$0xff]
    %v584 = vld [vmem:[#allocation9 + $0x150] sm:$0xff]
    %v585 = vld [vmem:[#allocation9 + $0x158] sm:$0xff]
    %v586 = vld [vmem:[#allocation9 + $0x160] sm:$0xff]
    %v587 = vld [vmem:[#allocation9 + $0x168] sm:$0xff]
    %v588 = vld [vmem:[#allocation9 + $0x170] sm:$0xff]
    %v589 = vld [vmem:[#allocation9 + $0x178] sm:$0xff]
    %v590 = vld [vmem:[%s4] sm:$0x1]
    %v591 = vld [vmem:[#allocation2] sm:$0xff]
    %s592 = smul.u32 0, 6
    %s593 = smul.addr %s592, 8
    %s594 = scalar_lea.vmem [#allocation3], %s593
    %v595 = vld [vmem:[%s594] sm:$0xff]
    %v596 = vld [vmem:[%s594 + $0x8] sm:$0xff]
    %v597 = vld [vmem:[%s594 + $0x10] sm:$0xff]
    %598 = vmatpush.msra.mxu0 %v587
    %599 = vmatpush.msra.mxu0 %v584
    %600 = vmatpush.msra.mxu0 %v581
    %601 = vmatpush.msra.mxu0 %v578
    %602 = vmatpush.msra.mxu0 %v575
    %603 = vmatpush.msra.mxu0 %v572
    %604 = vmatpush.msra.mxu0 %v569
    %605 = vmatpush.msra.mxu0 %v566
    %606 = vmatpush.msra.mxu0 %v563
    %607 = vmatpush.msra.mxu0 %v560
    %608 = vmatpush.msra.mxu0 %v557
    %609 = vmatpush.msra.mxu0 %v554
    %610 = vmatpush.msra.mxu0 %v551
    %611 = vmatpush.msra.mxu0 %v548
    %612 = vmatpush.msra.mxu0 %v545
    %613 = vmatpush.msra.mxu0 %v542
    %614 = vmatmul.f32.gmra.mxu0 %v591
    %v615 = vpop.f32.mrf.mxu0
    %v616 = vadd.f32 0.0, %v615
    %617 = vdwg.mxu0
    %618 = vmatpush.msra.mxu0 %v588
    %619 = vmatpush.msra.mxu0 %v585
    %620 = vmatpush.msra.mxu0 %v582
    %621 = vmatpush.msra.mxu0 %v579
    %622 = vmatpush.msra.mxu0 %v576
    %623 = vmatpush.msra.mxu0 %v573
    %624 = vmatpush.msra.mxu0 %v570
    %625 = vmatpush.msra.mxu0 %v567
    %626 = vmatpush.msra.mxu0 %v564
    %627 = vmatpush.msra.mxu0 %v561
    %628 = vmatpush.msra.mxu0 %v558
    %629 = vmatpush.msra.mxu0 %v555
    %630 = vmatpush.msra.mxu0 %v552
    %631 = vmatpush.msra.mxu0 %v549
    %632 = vmatpush.msra.mxu0 %v546
    %633 = vmatpush.msra.mxu0 %v543
    %634 = vmatmul.f32.gmra.mxu0 %v591
    %v635 = vpop.f32.mrf.mxu0
    %v636 = vadd.f32 0.0, %v635
    %637 = vdwg.mxu0
    %638 = vmatpush.msra.mxu0 %v589
    %639 = vmatpush.msra.mxu0 %v586
    %640 = vmatpush.msra.mxu0 %v583
    %641 = vmatpush.msra.mxu0 %v580
    %642 = vmatpush.msra.mxu0 %v577
    %643 = vmatpush.msra.mxu0 %v574
    %644 = vmatpush.msra.mxu0 %v571
    %645 = vmatpush.msra.mxu0 %v568
    %646 = vmatpush.msra.mxu0 %v565
    %647 = vmatpush.msra.mxu0 %v562
    %648 = vmatpush.msra.mxu0 %v559
    %649 = vmatpush.msra.mxu0 %v556
    %650 = vmatpush.msra.mxu0 %v553
    %651 = vmatpush.msra.mxu0 %v550
    %652 = vmatpush.msra.mxu0 %v547
    %653 = vmatpush.msra.mxu0 %v544
    %654 = vmatmul.f32.gmra.mxu0 %v591
    %v655 = vpop.f32.mrf.mxu0
    %v656 = vadd.f32 0.0, %v655
    %657 = vdwg.mxu0
    %v658 = vadd.f32 %v595, %v616
    %v659 = vxor.u32 %v658, 2147483648
    %v660 = vmul.f32 %v659, 1.442695
    %v661 = vpow.pop %v660
    %v662 = vadd.f32 %v661, 1.0
    %v663 = vrcp.pop %v662
    %v664 = vmul.f32 %v662, %v663
    %v665 = vsub.f32 1.0, %v664
    %v666 = vmul.f32 %v663, %v665
    %v667 = vadd.f32 %v663, %v666
    %vm668 = vweird.f32 %v662
    %vm669 = vweird.f32 %v663
    %vm670 = vmor %vm668, %vm669
    %v671 = vsel %vm670, %v663, %v667
    %v672 = vand.u32 2147483647, %v662
    %vm673 = vcmp.eq.f32.partialorder %v672, 8.507059e+37
    %v674 = vand.u32 %v662, 2147483648
    %v675 = vor.u32 1.1754944e-38, %v674
    %v676 = vsel %vm673, %v675, %v671
    %v677 = vmul.f32 1.0, %v676
    %v678 = vadd.f32 %v596, %v636
    %v679 = vxor.u32 %v678, 2147483648
    %v680 = vmul.f32 %v679, 1.442695
    %v681 = vpow.pop %v680
    %v682 = vadd.f32 %v681, 1.0
    %v683 = vrcp.pop %v682
    %v684 = vmul.f32 %v682, %v683
    %v685 = vsub.f32 1.0, %v684
    %v686 = vmul.f32 %v683, %v685
    %v687 = vadd.f32 %v683, %v686
    %vm688 = vweird.f32 %v682
    %vm689 = vweird.f32 %v683
    %vm690 = vmor %vm688, %vm689
    %v691 = vsel %vm690, %v683, %v687
    %v692 = vand.u32 2147483647, %v682
    %vm693 = vcmp.eq.f32.partialorder %v692, 8.507059e+37
    %v694 = vand.u32 %v682, 2147483648
    %v695 = vor.u32 1.1754944e-38, %v694
    %v696 = vsel %vm693, %v695, %v691
    %v697 = vmul.f32 1.0, %v696
    %v699 = vperm.slane %v590, 0
    %v701 = vadd.f32 %v656, %v699
    %v702 = vmul.f32 %v677, %v701
    %v703 = vadd.f32 %v597, %v702
    %v704 = vtanh.pop %v703
    %v705 = vsub.f32 1.0, %v697
    %v706 = vmul.f32 %v705, %v704
    %v707 = vmul.f32 %v697, %v591
    %v708 = vadd.f32 %v706, %v707
    %s709 = smul.u32 1, 6
    %s710 = smul.addr %s709, 8
    %s711 = scalar_lea.vmem [#allocation3], %s710
    %v712 = vld [vmem:[%s711] sm:$0xff]
    %v713 = vld [vmem:[%s711 + $0x8] sm:$0xff]
    %v714 = vld [vmem:[%s711 + $0x10] sm:$0xff]
    %715 = vmatpush.msra.mxu0 %v587
    %716 = vmatpush.msra.mxu0 %v584
    %717 = vmatpush.msra.mxu0 %v581
    %718 = vmatpush.msra.mxu0 %v578
    %719 = vmatpush.msra.mxu0 %v575
    %720 = vmatpush.msra.mxu0 %v572
    %721 = vmatpush.msra.mxu0 %v569
    %722 = vmatpush.msra.mxu0 %v566
    %723 = vmatpush.msra.mxu0 %v563
    %724 = vmatpush.msra.mxu0 %v560
    %725 = vmatpush.msra.mxu0 %v557
    %726 = vmatpush.msra.mxu0 %v554
    %727 = vmatpush.msra.mxu0 %v551
    %728 = vmatpush.msra.mxu0 %v548
    %729 = vmatpush.msra.mxu0 %v545
    %730 = vmatpush.msra.mxu0 %v542
    %731 = vmatmul.f32.gmra.mxu0 %v708
    %v732 = vpop.f32.mrf.mxu0
    %v733 = vadd.f32 0.0, %v732
    %734 = vdwg.mxu0
    %735 = vmatpush.msra.mxu0 %v588
    %736 = vmatpush.msra.mxu0 %v585
    %737 = vmatpush.msra.mxu0 %v582
    %738 = vmatpush.msra.mxu0 %v579
    %739 = vmatpush.msra.mxu0 %v576
    %740 = vmatpush.msra.mxu0 %v573
    %741 = vmatpush.msra.mxu0 %v570
    %742 = vmatpush.msra.mxu0 %v567
    %743 = vmatpush.msra.mxu0 %v564
    %744 = vmatpush.msra.mxu0 %v561
    %745 = vmatpush.msra.mxu0 %v558
    %746 = vmatpush.msra.mxu0 %v555
    %747 = vmatpush.msra.mxu0 %v552
    %748 = vmatpush.msra.mxu0 %v549
    %749 = vmatpush.msra.mxu0 %v546
    %750 = vmatpush.msra.mxu0 %v543
    %751 = vmatmul.f32.gmra.mxu0 %v708
    %v752 = vpop.f32.mrf.mxu0
    %v753 = vadd.f32 0.0, %v752
    %754 = vdwg.mxu0
    %755 = vmatpush.msra.mxu0 %v589
    %756 = vmatpush.msra.mxu0 %v586
    %757 = vmatpush.msra.mxu0 %v583
    %758 = vmatpush.msra.mxu0 %v580
    %759 = vmatpush.msra.mxu0 %v577
    %760 = vmatpush.msra.mxu0 %v574
    %761 = vmatpush.msra.mxu0 %v571
    %762 = vmatpush.msra.mxu0 %v568
    %763 = vmatpush.msra.mxu0 %v565
    %764 = vmatpush.msra.mxu0 %v562
    %765 = vmatpush.msra.mxu0 %v559
    %766 = vmatpush.msra.mxu0 %v556
    %767 = vmatpush.msra.mxu0 %v553
    %768 = vmatpush.msra.mxu0 %v550
    %769 = vmatpush.msra.mxu0 %v547
    %770 = vmatpush.msra.mxu0 %v544
    %771 = vmatmul.f32.gmra.mxu0 %v708
    %v772 = vpop.f32.mrf.mxu0
    %v773 = vadd.f32 0.0, %v772
    %774 = vdwg.mxu0
    %v775 = vadd.f32 %v712, %v733
    %v776 = vxor.u32 %v775, 2147483648
    %v777 = vmul.f32 %v776, 1.442695
    %v778 = vpow.pop %v777
    %v779 = vadd.f32 %v778, 1.0
    %v780 = vrcp.pop %v779
    %v781 = vmul.f32 %v779, %v780
    %v782 = vsub.f32 1.0, %v781
    %v783 = vmul.f32 %v780, %v782
    %v784 = vadd.f32 %v780, %v783
    %vm785 = vweird.f32 %v779
    %vm786 = vweird.f32 %v780
    %vm787 = vmor %vm785, %vm786
    %v788 = vsel %vm787, %v780, %v784
    %v789 = vand.u32 2147483647, %v779
    %vm790 = vcmp.eq.f32.partialorder %v789, 8.507059e+37
    %v791 = vand.u32 %v779, 2147483648
    %v792 = vor.u32 1.1754944e-38, %v791
    %v793 = vsel %vm790, %v792, %v788
    %v794 = vmul.f32 1.0, %v793
    %v795 = vadd.f32 %v713, %v753
    %v796 = vxor.u32 %v795, 2147483648
    %v797 = vmul.f32 %v796, 1.442695
    %v798 = vpow.pop %v797
    %v799 = vadd.f32 %v798, 1.0
    %v800 = vrcp.pop %v799
    %v801 = vmul.f32 %v799, %v800
    %v802 = vsub.f32 1.0, %v801
    %v803 = vmul.f32 %v800, %v802
    %v804 = vadd.f32 %v800, %v803
    %vm805 = vweird.f32 %v799
    %vm806 = vweird.f32 %v800
    %vm807 = vmor %vm805, %vm806
    %v808 = vsel %vm807, %v800, %v804
    %v809 = vand.u32 2147483647, %v799
    %vm810 = vcmp.eq.f32.partialorder %v809, 8.507059e+37
    %v811 = vand.u32 %v799, 2147483648
    %v812 = vor.u32 1.1754944e-38, %v811
    %v813 = vsel %vm810, %v812, %v808
    %v814 = vmul.f32 1.0, %v813
    %v815 = vadd.f32 %v773, %v699
    %v816 = vmul.f32 %v794, %v815
    %v817 = vadd.f32 %v714, %v816
    %v818 = vtanh.pop %v817
    %v819 = vsub.f32 1.0, %v814
    %v820 = vmul.f32 %v819, %v818
    %v821 = vmul.f32 %v814, %v708
    %v822 = vadd.f32 %v820, %v821
    %s823 = smul.u32 2, 6
    %s824 = smul.addr %s823, 8
    %s825 = scalar_lea.vmem [#allocation3], %s824
    %v826 = vld [vmem:[%s825] sm:$0xff]
    %v827 = vld [vmem:[%s825 + $0x8] sm:$0xff]
    %v828 = vld [vmem:[%s825 + $0x10] sm:$0xff]
    %829 = vmatpush.msra.mxu0 %v587
    %830 = vmatpush.msra.mxu0 %v584
    %831 = vmatpush.msra.mxu0 %v581
    %832 = vmatpush.msra.mxu0 %v578
    %833 = vmatpush.msra.mxu0 %v575
    %834 = vmatpush.msra.mxu0 %v572
    %835 = vmatpush.msra.mxu0 %v569
    %836 = vmatpush.msra.mxu0 %v566
    %837 = vmatpush.msra.mxu0 %v563
    %838 = vmatpush.msra.mxu0 %v560
    %839 = vmatpush.msra.mxu0 %v557
    %840 = vmatpush.msra.mxu0 %v554
    %841 = vmatpush.msra.mxu0 %v551
    %842 = vmatpush.msra.mxu0 %v548
    %843 = vmatpush.msra.mxu0 %v545
    %844 = vmatpush.msra.mxu0 %v542
    %845 = vmatmul.f32.gmra.mxu0 %v822
    %v846 = vpop.f32.mrf.mxu0
    %v847 = vadd.f32 0.0, %v846
    %848 = vdwg.mxu0
    %849 = vmatpush.msra.mxu0 %v588
    %850 = vmatpush.msra.mxu0 %v585
    %851 = vmatpush.msra.mxu0 %v582
    %852 = vmatpush.msra.mxu0 %v579
    %853 = vmatpush.msra.mxu0 %v576
    %854 = vmatpush.msra.mxu0 %v573
    %855 = vmatpush.msra.mxu0 %v570
    %856 = vmatpush.msra.mxu0 %v567
    %857 = vmatpush.msra.mxu0 %v564
    %858 = vmatpush.msra.mxu0 %v561
    %859 = vmatpush.msra.mxu0 %v558
    %860 = vmatpush.msra.mxu0 %v555
    %861 = vmatpush.msra.mxu0 %v552
    %862 = vmatpush.msra.mxu0 %v549
    %863 = vmatpush.msra.mxu0 %v546
    %864 = vmatpush.msra.mxu0 %v543
    %865 = vmatmul.f32.gmra.mxu0 %v822
    %v866 = vpop.f32.mrf.mxu0
    %v867 = vadd.f32 0.0, %v866
    %868 = vdwg.mxu0
    %869 = vmatpush.msra.mxu0 %v589
    %870 = vmatpush.msra.mxu0 %v586
    %871 = vmatpush.msra.mxu0 %v583
    %872 = vmatpush.msra.mxu0 %v580
    %873 = vmatpush.msra.mxu0 %v577
    %874 = vmatpush.msra.mxu0 %v574
    %875 = vmatpush.msra.mxu0 %v571
    %876 = vmatpush.msra.mxu0 %v568
    %877 = vmatpush.msra.mxu0 %v565
    %878 = vmatpush.msra.mxu0 %v562
    %879 = vmatpush.msra.mxu0 %v559
    %880 = vmatpush.msra.mxu0 %v556
    %881 = vmatpush.msra.mxu0 %v553
    %882 = vmatpush.msra.mxu0 %v550
    %883 = vmatpush.msra.mxu0 %v547
    %884 = vmatpush.msra.mxu0 %v544
    %885 = vmatmul.f32.gmra.mxu0 %v822
    %v886 = vpop.f32.mrf.mxu0
    %v887 = vadd.f32 0.0, %v886
    %888 = vdwg.mxu0
    %v889 = vadd.f32 %v826, %v847
    %v890 = vxor.u32 %v889, 2147483648
    %v891 = vmul.f32 %v890, 1.442695
    %v892 = vpow.pop %v891
    %v893 = vadd.f32 %v892, 1.0
    %v894 = vrcp.pop %v893
    %v895 = vmul.f32 %v893, %v894
    %v896 = vsub.f32 1.0, %v895
    %v897 = vmul.f32 %v894, %v896
    %v898 = vadd.f32 %v894, %v897
    %vm899 = vweird.f32 %v893
    %vm900 = vweird.f32 %v894
    %vm901 = vmor %vm899, %vm900
    %v902 = vsel %vm901, %v894, %v898
    %v903 = vand.u32 2147483647, %v893
    %vm904 = vcmp.eq.f32.partialorder %v903, 8.507059e+37
    %v905 = vand.u32 %v893, 2147483648
    %v906 = vor.u32 1.1754944e-38, %v905
    %v907 = vsel %vm904, %v906, %v902
    %v908 = vmul.f32 1.0, %v907
    %v909 = vadd.f32 %v827, %v867
    %v910 = vxor.u32 %v909, 2147483648
    %v911 = vmul.f32 %v910, 1.442695
    %v912 = vpow.pop %v911
    %v913 = vadd.f32 %v912, 1.0
    %v914 = vrcp.pop %v913
    %v915 = vmul.f32 %v913, %v914
    %v916 = vsub.f32 1.0, %v915
    %v917 = vmul.f32 %v914, %v916
    %v918 = vadd.f32 %v914, %v917
    %vm919 = vweird.f32 %v913
    %vm920 = vweird.f32 %v914
    %vm921 = vmor %vm919, %vm920
    %v922 = vsel %vm921, %v914, %v918
    %v923 = vand.u32 2147483647, %v913
    %vm924 = vcmp.eq.f32.partialorder %v923, 8.507059e+37
    %v925 = vand.u32 %v913, 2147483648
    %v926 = vor.u32 1.1754944e-38, %v925
    %v927 = vsel %vm924, %v926, %v922
    %v928 = vmul.f32 1.0, %v927
    %v929 = vadd.f32 %v887, %v699
    %v930 = vmul.f32 %v908, %v929
    %v931 = vadd.f32 %v828, %v930
    %v932 = vtanh.pop %v931
    %v933 = vsub.f32 1.0, %v928
    %v934 = vmul.f32 %v933, %v932
    %v935 = vmul.f32 %v928, %v822
    %v936 = vadd.f32 %v934, %v935
    %s937 = smul.u32 3, 6
    %s938 = smul.addr %s937, 8
    %s939 = scalar_lea.vmem [#allocation3], %s938
    %v940 = vld [vmem:[%s939] sm:$0xff]
    %v941 = vld [vmem:[%s939 + $0x8] sm:$0xff]
    %v942 = vld [vmem:[%s939 + $0x10] sm:$0xff]
    %943 = vmatpush.msra.mxu0 %v587
    %944 = vmatpush.msra.mxu0 %v584
    %945 = vmatpush.msra.mxu0 %v581
    %946 = vmatpush.msra.mxu0 %v578
    %947 = vmatpush.msra.mxu0 %v575
    %948 = vmatpush.msra.mxu0 %v572
    %949 = vmatpush.msra.mxu0 %v569
    %950 = vmatpush.msra.mxu0 %v566
    %951 = vmatpush.msra.mxu0 %v563
    %952 = vmatpush.msra.mxu0 %v560
    %953 = vmatpush.msra.mxu0 %v557
    %954 = vmatpush.msra.mxu0 %v554
    %955 = vmatpush.msra.mxu0 %v551
    %956 = vmatpush.msra.mxu0 %v548
    %957 = vmatpush.msra.mxu0 %v545
    %958 = vmatpush.msra.mxu0 %v542
    %959 = vmatmul.f32.gmra.mxu0 %v936
    %v960 = vpop.f32.mrf.mxu0
    %v961 = vadd.f32 0.0, %v960
    %962 = vdwg.mxu0
    %963 = vmatpush.msra.mxu0 %v588
    %964 = vmatpush.msra.mxu0 %v585
    %965 = vmatpush.msra.mxu0 %v582
    %966 = vmatpush.msra.mxu0 %v579
    %967 = vmatpush.msra.mxu0 %v576
    %968 = vmatpush.msra.mxu0 %v573
    %969 = vmatpush.msra.mxu0 %v570
    %970 = vmatpush.msra.mxu0 %v567
    %971 = vmatpush.msra.mxu0 %v564
    %972 = vmatpush.msra.mxu0 %v561
    %973 = vmatpush.msra.mxu0 %v558
    %974 = vmatpush.msra.mxu0 %v555
    %975 = vmatpush.msra.mxu0 %v552
    %976 = vmatpush.msra.mxu0 %v549
    %977 = vmatpush.msra.mxu0 %v546
    %978 = vmatpush.msra.mxu0 %v543
    %979 = vmatmul.f32.gmra.mxu0 %v936
    %v980 = vpop.f32.mrf.mxu0
    %v981 = vadd.f32 0.0, %v980
    %982 = vdwg.mxu0
    %983 = vmatpush.msra.mxu0 %v589
    %984 = vmatpush.msra.mxu0 %v586
    %985 = vmatpush.msra.mxu0 %v583
    %986 = vmatpush.msra.mxu0 %v580
    %987 = vmatpush.msra.mxu0 %v577
    %988 = vmatpush.msra.mxu0 %v574
    %989 = vmatpush.msra.mxu0 %v571
    %990 = vmatpush.msra.mxu0 %v568
    %991 = vmatpush.msra.mxu0 %v565
    %992 = vmatpush.msra.mxu0 %v562
    %993 = vmatpush.msra.mxu0 %v559
    %994 = vmatpush.msra.mxu0 %v556
    %995 = vmatpush.msra.mxu0 %v553
    %996 = vmatpush.msra.mxu0 %v550
    %997 = vmatpush.msra.mxu0 %v547
    %998 = vmatpush.msra.mxu0 %v544
    %999 = vmatmul.f32.gmra.mxu0 %v936
    %v1000 = vpop.f32.mrf.mxu0
    %v1001 = vadd.f32 0.0, %v1000
    %1002 = vdwg.mxu0
    %v1003 = vadd.f32 %v940, %v961
    %v1004 = vxor.u32 %v1003, 2147483648
    %v1005 = vmul.f32 %v1004, 1.442695
    %v1006 = vpow.pop %v1005
    %v1007 = vadd.f32 %v1006, 1.0
    %v1008 = vrcp.pop %v1007
    %v1009 = vmul.f32 %v1007, %v1008
    %v1010 = vsub.f32 1.0, %v1009
    %v1011 = vmul.f32 %v1008, %v1010
    %v1012 = vadd.f32 %v1008, %v1011
    %vm1013 = vweird.f32 %v1007
    %vm1014 = vweird.f32 %v1008
    %vm1015 = vmor %vm1013, %vm1014
    %v1016 = vsel %vm1015, %v1008, %v1012
    %v1017 = vand.u32 2147483647, %v1007
    %vm1018 = vcmp.eq.f32.partialorder %v1017, 8.507059e+37
    %v1019 = vand.u32 %v1007, 2147483648
    %v1020 = vor.u32 1.1754944e-38, %v1019
    %v1021 = vsel %vm1018, %v1020, %v1016
    %v1022 = vmul.f32 1.0, %v1021
    %v1023 = vadd.f32 %v941, %v981
    %v1024 = vxor.u32 %v1023, 2147483648
    %v1025 = vmul.f32 %v1024, 1.442695
    %v1026 = vpow.pop %v1025
    %v1027 = vadd.f32 %v1026, 1.0
    %v1028 = vrcp.pop %v1027
    %v1029 = vmul.f32 %v1027, %v1028
    %v1030 = vsub.f32 1.0, %v1029
    %v1031 = vmul.f32 %v1028, %v1030
    %v1032 = vadd.f32 %v1028, %v1031
    %vm1033 = vweird.f32 %v1027
    %vm1034 = vweird.f32 %v1028
    %vm1035 = vmor %vm1033, %vm1034
    %v1036 = vsel %vm1035, %v1028, %v1032
    %v1037 = vand.u32 2147483647, %v1027
    %vm1038 = vcmp.eq.f32.partialorder %v1037, 8.507059e+37
    %v1039 = vand.u32 %v1027, 2147483648
    %v1040 = vor.u32 1.1754944e-38, %v1039
    %v1041 = vsel %vm1038, %v1040, %v1036
    %v1042 = vmul.f32 1.0, %v1041
    %v1043 = vadd.f32 %v1001, %v699
    %v1044 = vmul.f32 %v1022, %v1043
    %v1045 = vadd.f32 %v942, %v1044
    %v1046 = vtanh.pop %v1045
    %v1047 = vsub.f32 1.0, %v1042
    %v1048 = vmul.f32 %v1047, %v1046
    %v1049 = vmul.f32 %v1042, %v936
    %v1050 = vadd.f32 %v1048, %v1049
    %s1051 = smul.u32 4, 6
    %s1052 = smul.addr %s1051, 8
    %s1053 = scalar_lea.vmem [#allocation3], %s1052
    %v1054 = vld [vmem:[%s1053] sm:$0xff]
    %v1055 = vld [vmem:[%s1053 + $0x8] sm:$0xff]
    %v1056 = vld [vmem:[%s1053 + $0x10] sm:$0xff]
    %1057 = vmatpush.msra.mxu0 %v587
    %1058 = vmatpush.msra.mxu0 %v584
    %1059 = vmatpush.msra.mxu0 %v581
    %1060 = vmatpush.msra.mxu0 %v578
    %1061 = vmatpush.msra.mxu0 %v575
    %1062 = vmatpush.msra.mxu0 %v572
    %1063 = vmatpush.msra.mxu0 %v569
    %1064 = vmatpush.msra.mxu0 %v566
    %1065 = vmatpush.msra.mxu0 %v563
    %1066 = vmatpush.msra.mxu0 %v560
    %1067 = vmatpush.msra.mxu0 %v557
    %1068 = vmatpush.msra.mxu0 %v554
    %1069 = vmatpush.msra.mxu0 %v551
    %1070 = vmatpush.msra.mxu0 %v548
    %1071 = vmatpush.msra.mxu0 %v545
    %1072 = vmatpush.msra.mxu0 %v542
    %1073 = vmatmul.f32.gmra.mxu0 %v1050
    %v1074 = vpop.f32.mrf.mxu0
    %v1075 = vadd.f32 0.0, %v1074
    %1076 = vdwg.mxu0
    %1077 = vmatpush.msra.mxu0 %v588
    %1078 = vmatpush.msra.mxu0 %v585
    %1079 = vmatpush.msra.mxu0 %v582
    %1080 = vmatpush.msra.mxu0 %v579
    %1081 = vmatpush.msra.mxu0 %v576
    %1082 = vmatpush.msra.mxu0 %v573
    %1083 = vmatpush.msra.mxu0 %v570
    %1084 = vmatpush.msra.mxu0 %v567
    %1085 = vmatpush.msra.mxu0 %v564
    %1086 = vmatpush.msra.mxu0 %v561
    %1087 = vmatpush.msra.mxu0 %v558
    %1088 = vmatpush.msra.mxu0 %v555
    %1089 = vmatpush.msra.mxu0 %v552
    %1090 = vmatpush.msra.mxu0 %v549
    %1091 = vmatpush.msra.mxu0 %v546
    %1092 = vmatpush.msra.mxu0 %v543
    %1093 = vmatmul.f32.gmra.mxu0 %v1050
    %v1094 = vpop.f32.mrf.mxu0
    %v1095 = vadd.f32 0.0, %v1094
    %1096 = vdwg.mxu0
    %1097 = vmatpush.msra.mxu0 %v589
    %1098 = vmatpush.msra.mxu0 %v586
    %1099 = vmatpush.msra.mxu0 %v583
    %1100 = vmatpush.msra.mxu0 %v580
    %1101 = vmatpush.msra.mxu0 %v577
    %1102 = vmatpush.msra.mxu0 %v574
    %1103 = vmatpush.msra.mxu0 %v571
    %1104 = vmatpush.msra.mxu0 %v568
    %1105 = vmatpush.msra.mxu0 %v565
    %1106 = vmatpush.msra.mxu0 %v562
    %1107 = vmatpush.msra.mxu0 %v559
    %1108 = vmatpush.msra.mxu0 %v556
    %1109 = vmatpush.msra.mxu0 %v553
    %1110 = vmatpush.msra.mxu0 %v550
    %1111 = vmatpush.msra.mxu0 %v547
    %1112 = vmatpush.msra.mxu0 %v544
    %1113 = vmatmul.f32.gmra.mxu0 %v1050
    %v1114 = vpop.f32.mrf.mxu0
    %v1115 = vadd.f32 0.0, %v1114
    %1116 = vdwg.mxu0
    %v1117 = vadd.f32 %v1054, %v1075
    %v1118 = vxor.u32 %v1117, 2147483648
    %v1119 = vmul.f32 %v1118, 1.442695
    %v1120 = vpow.pop %v1119
    %v1121 = vadd.f32 %v1120, 1.0
    %v1122 = vrcp.pop %v1121
    %v1123 = vmul.f32 %v1121, %v1122
    %v1124 = vsub.f32 1.0, %v1123
    %v1125 = vmul.f32 %v1122, %v1124
    %v1126 = vadd.f32 %v1122, %v1125
    %vm1127 = vweird.f32 %v1121
    %vm1128 = vweird.f32 %v1122
    %vm1129 = vmor %vm1127, %vm1128
    %v1130 = vsel %vm1129, %v1122, %v1126
    %v1131 = vand.u32 2147483647, %v1121
    %vm1132 = vcmp.eq.f32.partialorder %v1131, 8.507059e+37
    %v1133 = vand.u32 %v1121, 2147483648
    %v1134 = vor.u32 1.1754944e-38, %v1133
    %v1135 = vsel %vm1132, %v1134, %v1130
    %v1136 = vmul.f32 1.0, %v1135
    %v1137 = vadd.f32 %v1055, %v1095
    %v1138 = vxor.u32 %v1137, 2147483648
    %v1139 = vmul.f32 %v1138, 1.442695
    %v1140 = vpow.pop %v1139
    %v1141 = vadd.f32 %v1140, 1.0
    %v1142 = vrcp.pop %v1141
    %v1143 = vmul.f32 %v1141, %v1142
    %v1144 = vsub.f32 1.0, %v1143
    %v1145 = vmul.f32 %v1142, %v1144
    %v1146 = vadd.f32 %v1142, %v1145
    %vm1147 = vweird.f32 %v1141
    %vm1148 = vweird.f32 %v1142
    %vm1149 = vmor %vm1147, %vm1148
    %v1150 = vsel %vm1149, %v1142, %v1146
    %v1151 = vand.u32 2147483647, %v1141
    %vm1152 = vcmp.eq.f32.partialorder %v1151, 8.507059e+37
    %v1153 = vand.u32 %v1141, 2147483648
    %v1154 = vor.u32 1.1754944e-38, %v1153
    %v1155 = vsel %vm1152, %v1154, %v1150
    %v1156 = vmul.f32 1.0, %v1155
    %v1157 = vadd.f32 %v1115, %v699
    %v1158 = vmul.f32 %v1136, %v1157
    %v1159 = vadd.f32 %v1056, %v1158
    %v1160 = vtanh.pop %v1159
    %v1161 = vsub.f32 1.0, %v1156
    %v1162 = vmul.f32 %v1161, %v1160
    %v1163 = vmul.f32 %v1156, %v1050
    %v1164 = vadd.f32 %v1162, %v1163
    %s1165 = smul.u32 5, 6
    %s1166 = smul.addr %s1165, 8
    %s1167 = scalar_lea.vmem [#allocation3], %s1166
    %v1168 = vld [vmem:[%s1167] sm:$0xff]
    %v1169 = vld [vmem:[%s1167 + $0x8] sm:$0xff]
    %v1170 = vld [vmem:[%s1167 + $0x10] sm:$0xff]
    %1171 = vmatpush.msra.mxu0 %v587
    %1172 = vmatpush.msra.mxu0 %v584
    %1173 = vmatpush.msra.mxu0 %v581
    %1174 = vmatpush.msra.mxu0 %v578
    %1175 = vmatpush.msra.mxu0 %v575
    %1176 = vmatpush.msra.mxu0 %v572
    %1177 = vmatpush.msra.mxu0 %v569
    %1178 = vmatpush.msra.mxu0 %v566
    %1179 = vmatpush.msra.mxu0 %v563
    %1180 = vmatpush.msra.mxu0 %v560
    %1181 = vmatpush.msra.mxu0 %v557
    %1182 = vmatpush.msra.mxu0 %v554
    %1183 = vmatpush.msra.mxu0 %v551
    %1184 = vmatpush.msra.mxu0 %v548
    %1185 = vmatpush.msra.mxu0 %v545
    %1186 = vmatpush.msra.mxu0 %v542
    %1187 = vmatmul.f32.gmra.mxu0 %v1164
    %v1188 = vpop.f32.mrf.mxu0
    %v1189 = vadd.f32 0.0, %v1188
    %1190 = vdwg.mxu0
    %1191 = vmatpush.msra.mxu0 %v588
    %1192 = vmatpush.msra.mxu0 %v585
    %1193 = vmatpush.msra.mxu0 %v582
    %1194 = vmatpush.msra.mxu0 %v579
    %1195 = vmatpush.msra.mxu0 %v576
    %1196 = vmatpush.msra.mxu0 %v573
    %1197 = vmatpush.msra.mxu0 %v570
    %1198 = vmatpush.msra.mxu0 %v567
    %1199 = vmatpush.msra.mxu0 %v564
    %1200 = vmatpush.msra.mxu0 %v561
    %1201 = vmatpush.msra.mxu0 %v558
    %1202 = vmatpush.msra.mxu0 %v555
    %1203 = vmatpush.msra.mxu0 %v552
    %1204 = vmatpush.msra.mxu0 %v549
    %1205 = vmatpush.msra.mxu0 %v546
    %1206 = vmatpush.msra.mxu0 %v543
    %1207 = vmatmul.f32.gmra.mxu0 %v1164
    %v1208 = vpop.f32.mrf.mxu0
    %v1209 = vadd.f32 0.0, %v1208
    %1210 = vdwg.mxu0
    %1211 = vmatpush.msra.mxu0 %v589
    %1212 = vmatpush.msra.mxu0 %v586
    %1213 = vmatpush.msra.mxu0 %v583
    %1214 = vmatpush.msra.mxu0 %v580
    %1215 = vmatpush.msra.mxu0 %v577
    %1216 = vmatpush.msra.mxu0 %v574
    %1217 = vmatpush.msra.mxu0 %v571
    %1218 = vmatpush.msra.mxu0 %v568
    %1219 = vmatpush.msra.mxu0 %v565
    %1220 = vmatpush.msra.mxu0 %v562
    %1221 = vmatpush.msra.mxu0 %v559
    %1222 = vmatpush.msra.mxu0 %v556
    %1223 = vmatpush.msra.mxu0 %v553
    %1224 = vmatpush.msra.mxu0 %v550
    %1225 = vmatpush.msra.mxu0 %v547
    %1226 = vmatpush.msra.mxu0 %v544
    %1227 = vmatmul.f32.gmra.mxu0 %v1164
    %v1228 = vpop.f32.mrf.mxu0
    %v1229 = vadd.f32 0.0, %v1228
    %1230 = vdwg.mxu0
    %v1231 = vadd.f32 %v1168, %v1189
    %v1232 = vxor.u32 %v1231, 2147483648
    %v1233 = vmul.f32 %v1232, 1.442695
    %v1234 = vpow.pop %v1233
    %v1235 = vadd.f32 %v1234, 1.0
    %v1236 = vrcp.pop %v1235
    %v1237 = vmul.f32 %v1235, %v1236
    %v1238 = vsub.f32 1.0, %v1237
    %v1239 = vmul.f32 %v1236, %v1238
    %v1240 = vadd.f32 %v1236, %v1239
    %vm1241 = vweird.f32 %v1235
    %vm1242 = vweird.f32 %v1236
    %vm1243 = vmor %vm1241, %vm1242
    %v1244 = vsel %vm1243, %v1236, %v1240
    %v1245 = vand.u32 2147483647, %v1235
    %vm1246 = vcmp.eq.f32.partialorder %v1245, 8.507059e+37
    %v1247 = vand.u32 %v1235, 2147483648
    %v1248 = vor.u32 1.1754944e-38, %v1247
    %v1249 = vsel %vm1246, %v1248, %v1244
    %v1250 = vmul.f32 1.0, %v1249
    %v1251 = vadd.f32 %v1169, %v1209
    %v1252 = vxor.u32 %v1251, 2147483648
    %v1253 = vmul.f32 %v1252, 1.442695
    %v1254 = vpow.pop %v1253
    %v1255 = vadd.f32 %v1254, 1.0
    %v1256 = vrcp.pop %v1255
    %v1257 = vmul.f32 %v1255, %v1256
    %v1258 = vsub.f32 1.0, %v1257
    %v1259 = vmul.f32 %v1256, %v1258
    %v1260 = vadd.f32 %v1256, %v1259
    %vm1261 = vweird.f32 %v1255
    %vm1262 = vweird.f32 %v1256
    %vm1263 = vmor %vm1261, %vm1262
    %v1264 = vsel %vm1263, %v1256, %v1260
    %v1265 = vand.u32 2147483647, %v1255
    %vm1266 = vcmp.eq.f32.partialorder %v1265, 8.507059e+37
    %v1267 = vand.u32 %v1255, 2147483648
    %v1268 = vor.u32 1.1754944e-38, %v1267
    %v1269 = vsel %vm1266, %v1268, %v1264
    %v1270 = vmul.f32 1.0, %v1269
    %v1271 = vadd.f32 %v1229, %v699
    %v1272 = vmul.f32 %v1250, %v1271
    %v1273 = vadd.f32 %v1170, %v1272
    %v1274 = vtanh.pop %v1273
    %v1275 = vsub.f32 1.0, %v1270
    %v1276 = vmul.f32 %v1275, %v1274
    %v1277 = vmul.f32 %v1270, %v1164
    %v1278 = vadd.f32 %v1276, %v1277
    %s1279 = smul.u32 6, 6
    %s1280 = smul.addr %s1279, 8
    %s1281 = scalar_lea.vmem [#allocation3], %s1280
    %v1282 = vld [vmem:[%s1281] sm:$0xff]
    %v1283 = vld [vmem:[%s1281 + $0x8] sm:$0xff]
    %v1284 = vld [vmem:[%s1281 + $0x10] sm:$0xff]
    %1285 = vmatpush.msra.mxu0 %v587
    %1286 = vmatpush.msra.mxu0 %v584
    %1287 = vmatpush.msra.mxu0 %v581
    %1288 = vmatpush.msra.mxu0 %v578
    %1289 = vmatpush.msra.mxu0 %v575
    %1290 = vmatpush.msra.mxu0 %v572
    %1291 = vmatpush.msra.mxu0 %v569
    %1292 = vmatpush.msra.mxu0 %v566
    %1293 = vmatpush.msra.mxu0 %v563
    %1294 = vmatpush.msra.mxu0 %v560
    %1295 = vmatpush.msra.mxu0 %v557
    %1296 = vmatpush.msra.mxu0 %v554
    %1297 = vmatpush.msra.mxu0 %v551
    %1298 = vmatpush.msra.mxu0 %v548
    %1299 = vmatpush.msra.mxu0 %v545
    %1300 = vmatpush.msra.mxu0 %v542
    %1301 = vmatmul.f32.gmra.mxu0 %v1278
    %v1302 = vpop.f32.mrf.mxu0
    %v1303 = vadd.f32 0.0, %v1302
    %1304 = vdwg.mxu0
    %1305 = vmatpush.msra.mxu0 %v588
    %1306 = vmatpush.msra.mxu0 %v585
    %1307 = vmatpush.msra.mxu0 %v582
    %1308 = vmatpush.msra.mxu0 %v579
    %1309 = vmatpush.msra.mxu0 %v576
    %1310 = vmatpush.msra.mxu0 %v573
    %1311 = vmatpush.msra.mxu0 %v570
    %1312 = vmatpush.msra.mxu0 %v567
    %1313 = vmatpush.msra.mxu0 %v564
    %1314 = vmatpush.msra.mxu0 %v561
    %1315 = vmatpush.msra.mxu0 %v558
    %1316 = vmatpush.msra.mxu0 %v555
    %1317 = vmatpush.msra.mxu0 %v552
    %1318 = vmatpush.msra.mxu0 %v549
    %1319 = vmatpush.msra.mxu0 %v546
    %1320 = vmatpush.msra.mxu0 %v543
    %1321 = vmatmul.f32.gmra.mxu0 %v1278
    %v1322 = vpop.f32.mrf.mxu0
    %v1323 = vadd.f32 0.0, %v1322
    %1324 = vdwg.mxu0
    %1325 = vmatpush.msra.mxu0 %v589
    %1326 = vmatpush.msra.mxu0 %v586
    %1327 = vmatpush.msra.mxu0 %v583
    %1328 = vmatpush.msra.mxu0 %v580
    %1329 = vmatpush.msra.mxu0 %v577
    %1330 = vmatpush.msra.mxu0 %v574
    %1331 = vmatpush.msra.mxu0 %v571
    %1332 = vmatpush.msra.mxu0 %v568
    %1333 = vmatpush.msra.mxu0 %v565
    %1334 = vmatpush.msra.mxu0 %v562
    %1335 = vmatpush.msra.mxu0 %v559
    %1336 = vmatpush.msra.mxu0 %v556
    %1337 = vmatpush.msra.mxu0 %v553
    %1338 = vmatpush.msra.mxu0 %v550
    %1339 = vmatpush.msra.mxu0 %v547
    %1340 = vmatpush.msra.mxu0 %v544
    %1341 = vmatmul.f32.gmra.mxu0 %v1278
    %v1342 = vpop.f32.mrf.mxu0
    %v1343 = vadd.f32 0.0, %v1342
    %1344 = vdwg.mxu0
    %v1345 = vadd.f32 %v1282, %v1303
    %v1346 = vxor.u32 %v1345, 2147483648
    %v1347 = vmul.f32 %v1346, 1.442695
    %v1348 = vpow.pop %v1347
    %v1349 = vadd.f32 %v1348, 1.0
    %v1350 = vrcp.pop %v1349
    %v1351 = vmul.f32 %v1349, %v1350
    %v1352 = vsub.f32 1.0, %v1351
    %v1353 = vmul.f32 %v1350, %v1352
    %v1354 = vadd.f32 %v1350, %v1353
    %vm1355 = vweird.f32 %v1349
    %vm1356 = vweird.f32 %v1350
    %vm1357 = vmor %vm1355, %vm1356
    %v1358 = vsel %vm1357, %v1350, %v1354
    %v1359 = vand.u32 2147483647, %v1349
    %vm1360 = vcmp.eq.f32.partialorder %v1359, 8.507059e+37
    %v1361 = vand.u32 %v1349, 2147483648
    %v1362 = vor.u32 1.1754944e-38, %v1361
    %v1363 = vsel %vm1360, %v1362, %v1358
    %v1364 = vmul.f32 1.0, %v1363
    %v1365 = vadd.f32 %v1283, %v1323
    %v1366 = vxor.u32 %v1365, 2147483648
    %v1367 = vmul.f32 %v1366, 1.442695
    %v1368 = vpow.pop %v1367
    %v1369 = vadd.f32 %v1368, 1.0
    %v1370 = vrcp.pop %v1369
    %v1371 = vmul.f32 %v1369, %v1370
    %v1372 = vsub.f32 1.0, %v1371
    %v1373 = vmul.f32 %v1370, %v1372
    %v1374 = vadd.f32 %v1370, %v1373
    %vm1375 = vweird.f32 %v1369
    %vm1376 = vweird.f32 %v1370
    %vm1377 = vmor %vm1375, %vm1376
    %v1378 = vsel %vm1377, %v1370, %v1374
    %v1379 = vand.u32 2147483647, %v1369
    %vm1380 = vcmp.eq.f32.partialorder %v1379, 8.507059e+37
    %v1381 = vand.u32 %v1369, 2147483648
    %v1382 = vor.u32 1.1754944e-38, %v1381
    %v1383 = vsel %vm1380, %v1382, %v1378
    %v1384 = vmul.f32 1.0, %v1383
    %v1385 = vadd.f32 %v1343, %v699
    %v1386 = vmul.f32 %v1364, %v1385
    %v1387 = vadd.f32 %v1284, %v1386
    %v1388 = vtanh.pop %v1387
    %v1389 = vsub.f32 1.0, %v1384
    %v1390 = vmul.f32 %v1389, %v1388
    %v1391 = vmul.f32 %v1384, %v1278
    %v1392 = vadd.f32 %v1390, %v1391
    %s1393 = smul.u32 7, 6
    %s1394 = smul.addr %s1393, 8
    %s1395 = scalar_lea.vmem [#allocation3], %s1394
    %v1396 = vld [vmem:[%s1395] sm:$0xff]
    %v1397 = vld [vmem:[%s1395 + $0x8] sm:$0xff]
    %v1398 = vld [vmem:[%s1395 + $0x10] sm:$0xff]
    %1399 = vmatpush.msra.mxu0 %v587
    %1400 = vmatpush.msra.mxu0 %v584
    %1401 = vmatpush.msra.mxu0 %v581
    %1402 = vmatpush.msra.mxu0 %v578
    %1403 = vmatpush.msra.mxu0 %v575
    %1404 = vmatpush.msra.mxu0 %v572
    %1405 = vmatpush.msra.mxu0 %v569
    %1406 = vmatpush.msra.mxu0 %v566
    %1407 = vmatpush.msra.mxu0 %v563
    %1408 = vmatpush.msra.mxu0 %v560
    %1409 = vmatpush.msra.mxu0 %v557
    %1410 = vmatpush.msra.mxu0 %v554
    %1411 = vmatpush.msra.mxu0 %v551
    %1412 = vmatpush.msra.mxu0 %v548
    %1413 = vmatpush.msra.mxu0 %v545
    %1414 = vmatpush.msra.mxu0 %v542
    %1415 = vmatmul.f32.gmra.mxu0 %v1392
    %v1416 = vpop.f32.mrf.mxu0
    %v1417 = vadd.f32 0.0, %v1416
    %1418 = vdwg.mxu0
    %1419 = vmatpush.msra.mxu0 %v588
    %1420 = vmatpush.msra.mxu0 %v585
    %1421 = vmatpush.msra.mxu0 %v582
    %1422 = vmatpush.msra.mxu0 %v579
    %1423 = vmatpush.msra.mxu0 %v576
    %1424 = vmatpush.msra.mxu0 %v573
    %1425 = vmatpush.msra.mxu0 %v570
    %1426 = vmatpush.msra.mxu0 %v567
    %1427 = vmatpush.msra.mxu0 %v564
    %1428 = vmatpush.msra.mxu0 %v561
    %1429 = vmatpush.msra.mxu0 %v558
    %1430 = vmatpush.msra.mxu0 %v555
    %1431 = vmatpush.msra.mxu0 %v552
    %1432 = vmatpush.msra.mxu0 %v549
    %1433 = vmatpush.msra.mxu0 %v546
    %1434 = vmatpush.msra.mxu0 %v543
    %1435 = vmatmul.f32.gmra.mxu0 %v1392
    %v1436 = vpop.f32.mrf.mxu0
    %v1437 = vadd.f32 0.0, %v1436
    %1438 = vdwg.mxu0
    %1439 = vmatpush.msra.mxu0 %v589
    %1440 = vmatpush.msra.mxu0 %v586
    %1441 = vmatpush.msra.mxu0 %v583
    %1442 = vmatpush.msra.mxu0 %v580
    %1443 = vmatpush.msra.mxu0 %v577
    %1444 = vmatpush.msra.mxu0 %v574
    %1445 = vmatpush.msra.mxu0 %v571
    %1446 = vmatpush.msra.mxu0 %v568
    %1447 = vmatpush.msra.mxu0 %v565
    %1448 = vmatpush.msra.mxu0 %v562
    %1449 = vmatpush.msra.mxu0 %v559
    %1450 = vmatpush.msra.mxu0 %v556
    %1451 = vmatpush.msra.mxu0 %v553
    %1452 = vmatpush.msra.mxu0 %v550
    %1453 = vmatpush.msra.mxu0 %v547
    %1454 = vmatpush.msra.mxu0 %v544
    %1455 = vmatmul.f32.gmra.mxu0 %v1392
    %v1456 = vpop.f32.mrf.mxu0
    %v1457 = vadd.f32 0.0, %v1456
    %1458 = vdwg.mxu0
    %v1459 = vadd.f32 %v1396, %v1417
    %v1460 = vxor.u32 %v1459, 2147483648
    %v1461 = vmul.f32 %v1460, 1.442695
    %v1462 = vpow.pop %v1461
    %v1463 = vadd.f32 %v1462, 1.0
    %v1464 = vrcp.pop %v1463
    %v1465 = vmul.f32 %v1463, %v1464
    %v1466 = vsub.f32 1.0, %v1465
    %v1467 = vmul.f32 %v1464, %v1466
    %v1468 = vadd.f32 %v1464, %v1467
    %vm1469 = vweird.f32 %v1463
    %vm1470 = vweird.f32 %v1464
    %vm1471 = vmor %vm1469, %vm1470
    %v1472 = vsel %vm1471, %v1464, %v1468
    %v1473 = vand.u32 2147483647, %v1463
    %vm1474 = vcmp.eq.f32.partialorder %v1473, 8.507059e+37
    %v1475 = vand.u32 %v1463, 2147483648
    %v1476 = vor.u32 1.1754944e-38, %v1475
    %v1477 = vsel %vm1474, %v1476, %v1472
    %v1478 = vmul.f32 1.0, %v1477
    %v1479 = vadd.f32 %v1397, %v1437
    %v1480 = vxor.u32 %v1479, 2147483648
    %v1481 = vmul.f32 %v1480, 1.442695
    %v1482 = vpow.pop %v1481
    %v1483 = vadd.f32 %v1482, 1.0
    %v1484 = vrcp.pop %v1483
    %v1485 = vmul.f32 %v1483, %v1484
    %v1486 = vsub.f32 1.0, %v1485
    %v1487 = vmul.f32 %v1484, %v1486
    %v1488 = vadd.f32 %v1484, %v1487
    %vm1489 = vweird.f32 %v1483
    %vm1490 = vweird.f32 %v1484
    %vm1491 = vmor %vm1489, %vm1490
    %v1492 = vsel %vm1491, %v1484, %v1488
    %v1493 = vand.u32 2147483647, %v1483
    %vm1494 = vcmp.eq.f32.partialorder %v1493, 8.507059e+37
    %v1495 = vand.u32 %v1483, 2147483648
    %v1496 = vor.u32 1.1754944e-38, %v1495
    %v1497 = vsel %vm1494, %v1496, %v1492
    %v1498 = vmul.f32 1.0, %v1497
    %v1499 = vadd.f32 %v1457, %v699
    %v1500 = vmul.f32 %v1478, %v1499
    %v1501 = vadd.f32 %v1398, %v1500
    %v1502 = vtanh.pop %v1501
    %v1503 = vsub.f32 1.0, %v1498
    %v1504 = vmul.f32 %v1503, %v1502
    %v1505 = vmul.f32 %v1498, %v1392
    %v1506 = vadd.f32 %v1504, %v1505
    %1507 = vst [vmem:[#allocation2] sm:$0xff] %v1506
    // Predicated region
    $region66: #{tpu_custom_call.1} parent=1 // pred_check
      %p1508 = pneg %p125
    $region67: #{tpu_custom_call.1} parent=1 // pred_check_branch
      %1510 = sbr.rel (%p1508) target = $region69
    $region68: #{tpu_custom_call.1} parent=1 // pred_region
      %v1511 = vld [vmem:[#allocation3 + $0x168] sm:$0xff]
      %v1512 = vld [vmem:[#allocation3 + $0x170] sm:$0xff]
      %v1513 = vld [vmem:[#allocation3 + $0x178] sm:$0xff]
      %v1514 = vxor.u32 %v1511, 2147483648
      %v1515 = vmul.f32 %v1514, 1.442695
      %v1516 = vpow.pop %v1515
      %v1517 = vadd.f32 %v1516, 1.0
      %v1518 = vrcp.pop %v1517
      %v1519 = vmul.f32 %v1517, %v1518
      %v1520 = vsub.f32 1.0, %v1519
      %v1521 = vmul.f32 %v1518, %v1520
      %v1522 = vadd.f32 %v1518, %v1521
      %vm1523 = vweird.f32 %v1517
      %vm1524 = vweird.f32 %v1518
      %vm1525 = vmor %vm1523, %vm1524
      %v1526 = vsel %vm1525, %v1518, %v1522
      %v1527 = vand.u32 2147483647, %v1517
      %vm1528 = vcmp.eq.f32.partialorder %v1527, 8.507059e+37
      %v1529 = vand.u32 %v1517, 2147483648
      %v1530 = vor.u32 1.1754944e-38, %v1529
      %v1531 = vsel %vm1528, %v1530, %v1526
      %v1532 = vmul.f32 1.0, %v1531
      %v1533 = vxor.u32 %v1512, 2147483648
      %v1534 = vmul.f32 %v1533, 1.442695
      %v1535 = vpow.pop %v1534
      %v1536 = vadd.f32 %v1535, 1.0
      %v1537 = vrcp.pop %v1536
      %v1538 = vmul.f32 %v1536, %v1537
      %v1539 = vsub.f32 1.0, %v1538
      %v1540 = vmul.f32 %v1537, %v1539
      %v1541 = vadd.f32 %v1537, %v1540
      %vm1542 = vweird.f32 %v1536
      %vm1543 = vweird.f32 %v1537
      %vm1544 = vmor %vm1542, %vm1543
      %v1545 = vsel %vm1544, %v1537, %v1541
      %v1546 = vand.u32 2147483647, %v1536
      %vm1547 = vcmp.eq.f32.partialorder %v1546, 8.507059e+37
      %v1548 = vand.u32 %v1536, 2147483648
      %v1549 = vor.u32 1.1754944e-38, %v1548
      %v1550 = vsel %vm1547, %v1549, %v1545
      %v1551 = vmul.f32 1.0, %v1550
      %v1552 = vld [vmem:[%s5] sm:$0x1]
      %v1554 = vperm.slane %v1552, 0
      %v1556 = vmul.f32 %v1532, %v1554
      %v1557 = vadd.f32 %v1513, %v1556
      %v1558 = vtanh.pop %v1557
      %v1559 = vsub.f32 1.0, %v1551
      %v1560 = vmul.f32 %v1559, %v1558
      %v1561 = vld [vmem:[#allocation12] sm:$0xff]
      %v1562 = vld [vmem:[#allocation12 + $0x8] sm:$0xff]
      %v1563 = vld [vmem:[#allocation12 + $0x10] sm:$0xff]
      %v1564 = vld [vmem:[#allocation12 + $0x18] sm:$0xff]
      %v1565 = vld [vmem:[#allocation12 + $0x20] sm:$0xff]
      %v1566 = vld [vmem:[#allocation12 + $0x28] sm:$0xff]
      %v1567 = vld [vmem:[#allocation12 + $0x30] sm:$0xff]
      %v1568 = vld [vmem:[#allocation12 + $0x38] sm:$0xff]
      %v1569 = vld [vmem:[#allocation12 + $0x40] sm:$0xff]
      %v1570 = vld [vmem:[#allocation12 + $0x48] sm:$0xff]
      %v1571 = vld [vmem:[#allocation12 + $0x50] sm:$0xff]
      %v1572 = vld [vmem:[#allocation12 + $0x58] sm:$0xff]
      %v1573 = vld [vmem:[#allocation12 + $0x60] sm:$0xff]
      %v1574 = vld [vmem:[#allocation12 + $0x68] sm:$0xff]
      %v1575 = vld [vmem:[#allocation12 + $0x70] sm:$0xff]
      %v1576 = vld [vmem:[#allocation12 + $0x78] sm:$0xff]
      %v1577 = vld [vmem:[#allocation13] sm:$0xff]
      %v1578 = vld [vmem:[#allocation13 + $0x8] sm:$0xff]
      %v1579 = vld [vmem:[#allocation13 + $0x10] sm:$0xff]
      %v1580 = vld [vmem:[#allocation13 + $0x18] sm:$0xff]
      %v1581 = vld [vmem:[#allocation13 + $0x20] sm:$0xff]
      %v1582 = vld [vmem:[#allocation13 + $0x28] sm:$0xff]
      %v1583 = vld [vmem:[#allocation13 + $0x30] sm:$0xff]
      %v1584 = vld [vmem:[#allocation13 + $0x38] sm:$0xff]
      %v1585 = vld [vmem:[#allocation13 + $0x40] sm:$0xff]
      %v1586 = vld [vmem:[#allocation13 + $0x48] sm:$0xff]
      %v1587 = vld [vmem:[#allocation13 + $0x50] sm:$0xff]
      %v1588 = vld [vmem:[#allocation13 + $0x58] sm:$0xff]
      %v1589 = vld [vmem:[#allocation13 + $0x60] sm:$0xff]
      %v1590 = vld [vmem:[#allocation13 + $0x68] sm:$0xff]
      %v1591 = vld [vmem:[#allocation13 + $0x70] sm:$0xff]
      %v1592 = vld [vmem:[#allocation13 + $0x78] sm:$0xff]
      %1593 = vmatpush.msra.mxu0 %v1592
      %1594 = vmatpush.msra.mxu0 %v1591
      %1595 = vmatpush.msra.mxu0 %v1590
      %1596 = vmatpush.msra.mxu0 %v1589
      %1597 = vmatpush.msra.mxu0 %v1588
      %1598 = vmatpush.msra.mxu0 %v1587
      %1599 = vmatpush.msra.mxu0 %v1586
      %1600 = vmatpush.msra.mxu0 %v1585
      %1601 = vmatpush.msra.mxu0 %v1584
      %1602 = vmatpush.msra.mxu0 %v1583
      %1603 = vmatpush.msra.mxu0 %v1582
      %1604 = vmatpush.msra.mxu0 %v1581
      %1605 = vmatpush.msra.mxu0 %v1580
      %1606 = vmatpush.msra.mxu0 %v1579
      %1607 = vmatpush.msra.mxu0 %v1578
      %1608 = vmatpush.msra.mxu0 %v1577
      %1609 = vmatmul.f32.gmra.mxu0 %v1560
      %v1610 = vpop.f32.mrf.mxu0
      %v1611 = vadd.f32 0.0, %v1610
      %1612 = vdwg.mxu0
      %1613 = vmatpush.msra.mxu0 %v1576
      %1614 = vmatpush.msra.mxu0 %v1575
      %1615 = vmatpush.msra.mxu0 %v1574
      %1616 = vmatpush.msra.mxu0 %v1573
      %1617 = vmatpush.msra.mxu0 %v1572
      %1618 = vmatpush.msra.mxu0 %v1571
      %1619 = vmatpush.msra.mxu0 %v1570
      %1620 = vmatpush.msra.mxu0 %v1569
      %1621 = vmatpush.msra.mxu0 %v1568
      %1622 = vmatpush.msra.mxu0 %v1567
      %1623 = vmatpush.msra.mxu0 %v1566
      %1624 = vmatpush.msra.mxu0 %v1565
      %1625 = vmatpush.msra.mxu0 %v1564
      %1626 = vmatpush.msra.mxu0 %v1563
      %1627 = vmatpush.msra.mxu0 %v1562
      %1628 = vmatpush.msra.mxu0 %v1561
      %1629 = vmatmul.f32.gmra.mxu0 %v1506
      %v1630 = vpop.f32.mrf.mxu0
      %v1631 = vadd.f32 %v1611, %v1630
      %1632 = vdwg.mxu0
      %v1633 = vld [vmem:[%s8] sm:$0x1]
      %v1635 = vperm.slane %v1633, 0
      %v1637 = vadd.f32 %v1631, %v1635
      %1638 = vst [vmem:[#allocation15] sm:$0xff] %v1637
    $region69: #{tpu_custom_call.1} parent=1 // pred_fallthru
      _
    // Predicated region
    $region70: #{tpu_custom_call.1} parent=1 // pred_check
      _
    $region71: #{tpu_custom_call.1} parent=1 // pred_check_branch
      %1640 = sbr.rel (0) target = $region73
    $region72: #{tpu_custom_call.1} parent=1 // pred_region
      %1642 = vsyncadd [#allocation6], 0
      %s1644 = sshll.u32 [#allocation15], 4
      %s1645 = int_to_ptr.vmem [resolvable:$true] %s1644
      %s1646 = sshll.u32 %s9, 4
      %s1647 = int_to_ptr.hbm [resolvable:$true] %s1646
      %1649 = dma.vmem_to_hbm [thread:$0]  %s1645, 128, %s1647, [#allocation6]
    $region73: #{tpu_custom_call.1} parent=1 // pred_fallthru
      _
    // Predicated region
    $region74: #{tpu_custom_call.1} parent=1 // pred_check
      _
    $region75: #{tpu_custom_call.1} parent=1 // pred_check_branch
      %1651 = sbr.rel (0) target = $region77
    $region76: #{tpu_custom_call.1} parent=1 // pred_region
      %1653 = dma.done [#allocation6], 128
    $region77: #{tpu_custom_call.1} parent=1 // pred_fallthru
      _
    %1654 = vsyncpa [#allocation5], 1
    %1655 = vsyncpa [#allocation8], 1
    %1656 = vsyncpa [#allocation11], 1
    %1657 = vsyncpa [#allocation14], 1
    %1658 = vsyncpa [#allocation6], 1

</llo_original>
